<compile_context>
chip_gen: v6e
topology: v6e:2x2x1
jax: 0.10.0
libtpu: 0.0.40
codegen_flags: <defaults>
</compile_context>

<pallas_src>
import functools

import jax
import jax.numpy as jnp
import numpy as np
from jax.experimental import pallas as pl
from jax.experimental.pallas import tpu as pltpu

P_GEM = 3.74
GEM_EPS = 1e-6
GEM_MAX = 10000.0
BN_EPS = 1e-5
LANE = 128


# ---------------------------------------------------------------------------
# Small helpers
# ---------------------------------------------------------------------------
def _round_up(n, m):
    return ((n + m - 1) // m) * m


def _pad_last(a, target):
    pad = target - a.shape[-1]
    if pad == 0:
        return a
    return jnp.pad(a, [(0, 0)] * (a.ndim - 1) + [(0, pad)])


def _pad_to(a, shape):
    return jnp.pad(a, [(0, t - s) for s, t in zip(a.shape, shape)])


def _vmem_capacity_bytes():
    try:
        return int(pltpu.get_tpu_info().vmem_capacity_bytes)
    except Exception:
        return 64 * 1024 * 1024          # conservative (v7x-sized) fallback


def _pick_b_tile(B, x_row_bytes, budget_bytes, target=256):
    """Largest B tile whose x block (~2 pipeline bufs + 3 f32 temps) fits budget."""
    max_tb = min(target, max(1, budget_bytes // max(1, 5 * x_row_bytes)))
    if B <= max_tb:
        return B
    tb = (max_tb // 8) * 8
    while tb >= 8 and B % tb:
        tb -= 8
    return tb if tb >= 8 else B          # always divides B on return


# ---------------------------------------------------------------------------
# Pallas kernel: one (B-tile, stripe) per grid step
# ---------------------------------------------------------------------------
def _pcb_stripe_kernel(x_ref, bn1_ref, w1_ref, fpk_ref, wcls_ref, bc_ref,
                       bt_ref, feat_ref, pred_ref, final_ref):
    """Grid = (B // tb, num_clf), semantics ("parallel", "arbitrary").

    x_ref    : (tb, H, sw, Cp)  one stripe of one B tile, channels on lanes
    bn1_ref  : (N, 2, Cp)       folded BN1 [scale, bias]      (VMEM-resident)
    w1_ref   : (N, Cp, Fp)      bf16 Linear(in_feat->feat_dim) (VMEM-resident)
    fpk_ref  : (N, 3, Fp)       [b1, bn2 scale, bn2 bias]      (VMEM-resident)
    wcls_ref : (N, Fp, 2*NCp)   bf16 [local clf | total clf slice]
    bc_ref   : (N, 1, NCp), bt_ref: (1, NCp)
    feat_ref : (tb, Fp)   pred_ref: (tb, NCp)   final_ref: (tb, NCp) accumulator
    """
    ni = pl.program_id(1)                       # stripe index (reduction axis)
    ncp = wcls_ref.shape[-1] // 2

    # --- GeMConst(p=3.74): clamp, pow(p), spatial mean, pow(1/p) -- f32, EUP --
    x = x_ref[...]                              # (tb, H, sw, Cp)
    xc = jnp.clip(x, GEM_EPS, GEM_MAX)
    xp = jnp.exp(P_GEM * jnp.log(xc))           # xc**p  (xc > 0)
    pooled = jnp.mean(xp, axis=(1, 2))          # (tb, Cp)  sublane/vreg reduce
    g = jnp.exp(jnp.log(pooled) / P_GEM)        # pooled**(1/p) > 0 => abs() dropped

    # --- BatchNorm1d(in_feat), inference, folded ------------------------------
    bn1 = bn1_ref[ni]                           # (2, Cp)
    h = g * bn1[0:1] + bn1[1:2]                 # (tb, Cp); padded channels -> 0

    # --- Linear(in_feat -> feat_dim): bf16 MXU, f32 accumulation --------------
    fpk = fpk_ref[ni]                           # (3, Fp)
    z = jnp.dot(h.astype(jnp.bfloat16), w1_ref[ni],
                preferred_element_type=jnp.float32) + fpk[0:1]

    # --- CELU(alpha=1) ---------------------------------------------------------
    c = jnp.where(z > 0.0, z, jnp.exp(jnp.minimum(z, 0.0)) - 1.0)

    # --- BatchNorm1d(feat_dim), inference, folded ------------------------------
    f = c * fpk[1:2] + fpk[2:3]                 # (tb, Fp)
    feat_ref[...] = f

    # --- local clf + this stripe's total-clf slice in ONE bf16 matmul ----------
    cls = jnp.dot(f.astype(jnp.bfloat16), wcls_ref[ni],
                  preferred_element_type=jnp.float32)        # (tb, 2*NCp)
    pred_ref[...] = cls[:, :ncp] + bc_ref[ni]

    # --- total_clf(cat(feats)) == sum over stripes of f @ wt_slice + bt --------
    tot = cls[:, ncp:]

    @pl.when(ni == 0)
    def _():
        final_ref[...] = tot + bt_ref[...]

    @pl.when(ni != 0)
    def _():
        final_ref[...] += tot


# ---------------------------------------------------------------------------
# Parameter construction (deterministic, synthetic)
# ---------------------------------------------------------------------------
def init_params(key, num_classes, feat_dim, num_clf, in_feat):
    ks = jax.random.split(key, 16)
    u = lambda k, s, lo=-0.1, hi=0.1: jax.random.uniform(k, s, jnp.float32, lo, hi)
    return {
        # per-stripe BatchNorm1d(in_feat)
        "bn1_gamma": u(ks[0], (num_clf, in_feat), 0.5, 1.5),
        "bn1_beta":  u(ks[1], (num_clf, in_feat)),
        "bn1_mean":  u(ks[2], (num_clf, in_feat)),
        "bn1_var":   u(ks[3], (num_clf, in_feat), 0.5, 1.5),
        # per-stripe Linear(in_feat -> feat_dim), stored transposed (C, F)
        "w1": u(ks[4], (num_clf, in_feat, feat_dim)),
        "b1": u(ks[5], (num_clf, feat_dim)),
        # per-stripe BatchNorm1d(feat_dim)
        "bn2_gamma": u(ks[6], (num_clf, feat_dim), 0.5, 1.5),
        "bn2_beta":  u(ks[7], (num_clf, feat_dim)),
        "bn2_mean":  u(ks[8], (num_clf, feat_dim)),
        "bn2_var":   u(ks[9], (num_clf, feat_dim), 0.5, 1.5),
        # per-stripe local classifier, stored transposed (F, NC)
        "wc": u(ks[10], (num_clf, feat_dim, num_classes)),
        "bc": u(ks[11], (num_clf, num_classes)),
        # total classifier, stored transposed (num_clf*F, NC)
        "wt": u(ks[12], (num_clf * feat_dim, num_classes)),
        "bt": u(ks[13], (num_classes,)),
    }


# ---------------------------------------------------------------------------
# One-time parameter folding / packing / padding (hoisted out of forward)
# ---------------------------------------------------------------------------
def pack_params(params):
    N, C, F = params["w1"].shape
    NC = params["bc"].shape[-1]
    Cp, Fp, NCp = _round_up(C, LANE), _round_up(F, LANE), _round_up(NC, LANE)

    bn1_scale = params["bn1_gamma"] * jax.lax.rsqrt(params["bn1_var"] + BN_EPS)
    bn1_bias = params["bn1_beta"] - params["bn1_mean"] * bn1_scale
    # zero-padded scale/bias => padded channels become exactly 0 before the matmul
    bn1 = _pad_last(jnp.stack([bn1_scale, bn1_bias], axis=1), Cp)     # (N,2,Cp)

    bn2_scale = params["bn2_gamma"] * jax.lax.rsqrt(params["bn2_var"] + BN_EPS)
    bn2_bias = params["bn2_beta"] - params["bn2_mean"] * bn2_scale
    fpk = jnp.stack([_pad_last(params["b1"], Fp),
                     _pad_last(bn2_scale, Fp),
                     _pad_last(bn2_bias, Fp)], axis=1)                # (N,3,Fp)

    w1 = _pad_to(params["w1"], (N, Cp, Fp)).astype(jnp.bfloat16)      # (N,Cp,Fp)
    wc = _pad_to(params["wc"], (N, Fp, NCp))
    wt = _pad_to(params["wt"].reshape(N, F, NC), (N, Fp, NCp))
    wcls = jnp.concatenate([wc, wt], axis=-1).astype(jnp.bfloat16)    # (N,Fp,2NCp)
    bc = _pad_last(params["bc"], NCp).reshape(N, 1, NCp)
    bt = _pad_last(params["bt"], NCp).reshape(1, NCp)
    return {"bn1": bn1, "w1": w1, "fpk": fpk, "wcls": wcls, "bc": bc, "bt": bt}


# ---------------------------------------------------------------------------
# Forward wrapper
# ---------------------------------------------------------------------------
@functools.partial(jax.jit, static_argnames=("num_clf", "feat_dim", "num_classes"))
def pcb_ring_head2_forward(x, packed, *, num_clf, feat_dim, num_classes):
    B, C, H, W = x.shape
    assert W % num_clf == 0                      # same assert as PyTorch forward
    sw = H // num_clf                            # PyTorch quirk: width from H,
    assert num_clf * sw <= W                     # sliced along W
    N, Cp, Fp = packed["w1"].shape
    NCp = packed["wcls"].shape[-1] // 2
    assert N == num_clf and Cp == _round_up(C, LANE)

    # --- glue: one channels-last transpose; stripe split + C pad are free -----
    xs = x[:, :, :, :num_clf * sw].astype(jnp.float32)       # (B, C, H, N*sw)
    xs = jnp.transpose(xs, (0, 2, 3, 1)).reshape(B, H, num_clf, sw, C)
    if Cp != C:
        xs = jnp.pad(xs, ((0, 0),) * 4 + ((0, Cp - C),))     # (B, H, N, sw, Cp)

    # --- per-generation VMEM budget, B tile, scoped limit ----------------------
    cap = _vmem_capacity_bytes()
    weight_bytes = sum(int(np.prod(packed[k].shape)) * packed[k].dtype.itemsize
                       for k in ("bn1", "w1", "fpk", "wcls", "bc", "bt"))
    budget = (cap * 3) // 4 - 2 * weight_bytes - (4 << 20)
    x_row_bytes = H * sw * Cp * 4
    tb = _pick_b_tile(B, x_row_bytes, max(budget, 1 << 20))
    nb = B // tb
    est = (2 * weight_bytes + 5 * tb * x_row_bytes
           + 4 * tb * (Fp + 3 * NCp) * 4 + (2 << 20))
    vmem_limit = int(min((cap * 3) // 4, max(32 << 20, est)))

    in_specs = [
        # x: streams one (B-tile, stripe) block per step
        pl.BlockSpec((tb, H, None, sw, Cp), lambda bi, ni: (bi, 0, ni, 0, 0)),
        # weights: constant block index -> DMA'd once, VMEM-resident
        pl.BlockSpec((N, 2, Cp),       lambda bi, ni: (0, 0, 0)),
        pl.BlockSpec((N, Cp, Fp),      lambda bi, ni: (0, 0, 0)),
        pl.BlockSpec((N, 3, Fp),       lambda bi, ni: (0, 0, 0)),
        pl.BlockSpec((N, Fp, 2 * NCp), lambda bi, ni: (0, 0, 0)),
        pl.BlockSpec((N, 1, NCp),      lambda bi, ni: (0, 0, 0)),
        pl.BlockSpec((1, NCp),         lambda bi, ni: (0, 0)),
    ]
    out_specs = [
        pl.BlockSpec((None, tb, Fp),  lambda bi, ni: (ni, bi, 0)),
        pl.BlockSpec((None, tb, NCp), lambda bi, ni: (ni, bi, 0)),
        pl.BlockSpec((tb, NCp),       lambda bi, ni: (bi, 0)),    # accumulator
    ]
    out_shape = [
        jax.ShapeDtypeStruct((N, B, Fp), jnp.float32),
        jax.ShapeDtypeStruct((N, B, NCp), jnp.float32),
        jax.ShapeDtypeStruct((B, NCp), jnp.float32),
    ]

    feat_p, pred_p, final_p = pl.pallas_call(
        _pcb_stripe_kernel,
        out_shape=out_shape,
        grid_spec=pltpu.PrefetchScalarGridSpec(
            num_scalar_prefetch=0,
            grid=(nb, num_clf),
            in_specs=in_specs,
            out_specs=out_specs,
        ),
        compiler_params=pltpu.CompilerParams(
            dimension_semantics=("parallel", "arbitrary"),
            vmem_limit_bytes=vmem_limit),
    )(xs, packed["bn1"], packed["w1"], packed["fpk"],
      packed["wcls"], packed["bc"], packed["bt"])

    # --- slice off lane padding -------------------------------------------------
    feats = feat_p[:, :, :feat_dim]                 # (N, B, F)
    preds = pred_p[:, :, :num_classes]              # (N, B, NC)
    final_clf = final_p[:, :num_classes]            # (B, NC)

    local_feat_list = [feats[i] for i in range(num_clf)]
    local_preds_list = [preds[i] for i in range(num_clf)] + [final_clf]
    return local_preds_list, local_feat_list


# ---------------------------------------------------------------------------
# Pure-JAX reference (mirrors the PyTorch forward, inference mode)
# ---------------------------------------------------------------------------
def _reference_forward(x, params, *, num_clf):
    hp = jax.lax.Precision.HIGHEST
    B, C, H, W = x.shape
    sw = H // num_clf
    bn1_s = params["bn1_gamma"] / jnp.sqrt(params["bn1_var"] + BN_EPS)
    bn1_b = params["bn1_beta"] - params["bn1_mean"] * bn1_s
    bn2_s = params["bn2_gamma"] / jnp.sqrt(params["bn2_var"] + BN_EPS)
    bn2_b = params["bn2_beta"] - params["bn2_mean"] * bn2_s
    feats, preds = [], []
    for i in range(num_clf):
        xi = x[:, :, :, i * sw:(i + 1) * sw].astype(jnp.float32)
        xc = jnp.clip(xi, GEM_EPS, GEM_MAX)
        pooled = jnp.mean(xc ** P_GEM, axis=(2, 3))
        g = jnp.abs(pooled ** (1.0 / P_GEM))
        h = g * bn1_s[i] + bn1_b[i]
        z = jnp.dot(h, params["w1"][i], precision=hp) + params["b1"][i]
        c = jnp.where(z > 0.0, z, jnp.exp(jnp.minimum(z, 0.0)) - 1.0)
        f = c * bn2_s[i] + bn2_b[i]
        feats.append(f)
        preds.append(jnp.dot(f, params["wc"][i], precision=hp) + params["bc"][i])
    final = jnp.dot(jnp.concatenate(feats, axis=1), params["wt"],
                    precision=hp) + params["bt"]
    return preds + [final], feats


# ---------------------------------------------------------------------------
# Demo
# ---------------------------------------------------------------------------
if __name__ == "__main__":
    num_classes, feat_dim, num_clf, in_feat = 10, 16, 4, 32
    B, H, W = 2, 8, 8                        # W % num_clf == 0, stripe_w = 2

    key = jax.random.PRNGKey(0)
    kx, kp = jax.random.split(key)
    x = jax.random.normal(kx, (B, in_feat, H, W), dtype=jnp.float32)
    params = init_params(kp, num_classes, feat_dim, num_clf, in_feat)

    # one-time packing (hoisted out of the per-call path)
    packed = jax.tree_util.tree_map(jax.block_until_ready, pack_params(params))

    preds_list, feats_list = pcb_ring_head2_forward(
        x, packed, num_clf=num_clf, feat_dim=feat_dim, num_classes=num_classes)
    preds_list = [jax.block_until_ready(p) for p in preds_list]
    feats_list = [jax.block_until_ready(f) for f in feats_list]

    assert len(preds_list) == num_clf + 1 and len(feats_list) == num_clf
    assert all(p.shape == (B, num_classes) for p in preds_list)
    assert all(f.shape == (B, feat_dim) for f in feats_list)
    assert all(bool(jnp.all(jnp.isfinite(p))) for p in preds_list)
    assert all(bool(jnp.all(jnp.isfinite(f))) for f in feats_list)

    # correctness vs. pure-JAX reference (tol covers bf16 MXU operands, f32 acc)
    ref_preds, ref_feats = _reference_forward(x, params, num_clf=num_clf)
    for a, b in zip(preds_list, ref_preds):
        np.testing.assert_allclose(np.asarray(a), np.asarray(b),
                                   rtol=2e-2, atol=2e-2)
    for a, b in zip(feats_list, ref_feats):
        np.testing.assert_allclose(np.asarray(a), np.asarray(b),
                                   rtol=2e-2, atol=2e-2)

    print("KERNEL_OK")
</pallas_src>

<mosaic_0001>
module attributes {stable_mosaic.version = 11 : i64} {
  func.func @_pcb_stripe_kernel(%arg0: i32, %arg1: i32, %arg2: memref<2x8x1x2x128xf32, #tpu.memory_space<vmem>>, %arg3: memref<4x2x128xf32, #tpu.memory_space<vmem>>, %arg4: memref<4x128x128xbf16, #tpu.memory_space<vmem>>, %arg5: memref<4x3x128xf32, #tpu.memory_space<vmem>>, %arg6: memref<4x128x256xbf16, #tpu.memory_space<vmem>>, %arg7: memref<4x1x128xf32, #tpu.memory_space<vmem>>, %arg8: memref<1x128xf32, #tpu.memory_space<vmem>>, %arg9: memref<1x2x128xf32, #tpu.memory_space<vmem>>, %arg10: memref<1x2x128xf32, #tpu.memory_space<vmem>>, %arg11: memref<2x128xf32, #tpu.memory_space<vmem>>) attributes {dimension_semantics = [#tpu.dimension_semantics<parallel>, #tpu.dimension_semantics<arbitrary>], iteration_bounds = array<i64: 1, 4>, scalar_prefetch = 0 : i64, scratch_operands = 0 : i64, tpu.core_type = #tpu.core_type<tc>, window_params = [{transform_indices = @transform_0, window_bounds = array<i64: 2, 8, 1, 2, 128>}, {pipeline_mode = #tpu.pipeline_mode<synchronous>, transform_indices = @transform_1, window_bounds = array<i64: 4, 2, 128>}, {pipeline_mode = #tpu.pipeline_mode<synchronous>, transform_indices = @transform_2, window_bounds = array<i64: 4, 128, 128>}, {pipeline_mode = #tpu.pipeline_mode<synchronous>, transform_indices = @transform_3, window_bounds = array<i64: 4, 3, 128>}, {pipeline_mode = #tpu.pipeline_mode<synchronous>, transform_indices = @transform_4, window_bounds = array<i64: 4, 128, 256>}, {pipeline_mode = #tpu.pipeline_mode<synchronous>, transform_indices = @transform_5, window_bounds = array<i64: 4, 1, 128>}, {pipeline_mode = #tpu.pipeline_mode<synchronous>, transform_indices = @transform_6, window_bounds = array<i64: 1, 128>}, {transform_indices = @transform_7, window_bounds = array<i64: 1, 2, 128>}, {transform_indices = @transform_8, window_bounds = array<i64: 1, 2, 128>}, {transform_indices = @transform_9, window_bounds = array<i64: 2, 128>}]} {
    %c0 = arith.constant 0 : index
    %c0_0 = arith.constant 0 : index
    %c0_1 = arith.constant 0 : index
    %c0_2 = arith.constant 0 : index
    %c0_3 = arith.constant 0 : index
    %0 = vector.load %arg2[%c0, %c0_0, %c0_1, %c0_2, %c0_3] : memref<2x8x1x2x128xf32, #tpu.memory_space<vmem>>, vector<2x8x1x2x128xf32>
    %1 = vector.shape_cast %0 : vector<2x8x1x2x128xf32> to vector<2x8x2x128xf32>
    %cst = arith.constant 9.99999997E-7 : f32
    %cst_4 = arith.constant 1.000000e+04 : f32
    %2 = vector.broadcast %cst : f32 to vector<2x8x2x128xf32>
    %3 = arith.maximumf %2, %1 : vector<2x8x2x128xf32>
    %4 = vector.broadcast %cst_4 : f32 to vector<2x8x2x128xf32>
    %5 = arith.minimumf %4, %3 : vector<2x8x2x128xf32>
    %6 = math.log %5 : vector<2x8x2x128xf32>
    %cst_5 = arith.constant 3.740000e+00 : f32
    %7 = vector.broadcast %cst_5 : f32 to vector<2x8x2x128xf32>
    %8 = arith.mulf %7, %6 : vector<2x8x2x128xf32>
    %9 = math.exp %8 : vector<2x8x2x128xf32>
    %cst_6 = arith.constant dense<0.000000e+00> : vector<2x128xf32>
    %10 = vector.multi_reduction <add>, %9, %cst_6 [1, 2] : vector<2x8x2x128xf32> to vector<2x128xf32>
    %cst_7 = arith.constant 1.600000e+01 : f32
    %11 = vector.broadcast %cst_7 : f32 to vector<2x128xf32>
    %12 = arith.divf %10, %11 : vector<2x128xf32>
    %13 = math.log %12 : vector<2x128xf32>
    %cst_8 = arith.constant 3.740000e+00 : f32
    %14 = vector.broadcast %cst_8 : f32 to vector<2x128xf32>
    %15 = arith.divf %13, %14 : vector<2x128xf32>
    %16 = math.exp %15 : vector<2x128xf32>
    %17 = arith.index_cast %arg1 : i32 to index
    %c0_9 = arith.constant 0 : index
    %c0_10 = arith.constant 0 : index
    %18 = vector.load %arg3[%17, %c0_9, %c0_10] : memref<4x2x128xf32, #tpu.memory_space<vmem>>, vector<1x2x128xf32>
    %19 = vector.shape_cast %18 : vector<1x2x128xf32> to vector<2x128xf32>
    %20 = vector.extract_strided_slice %19 {offsets = [0, 0], sizes = [1, 128], strides = [1, 1]} : vector<2x128xf32> to vector<1x128xf32>
    %21 = vector.broadcast %20 : vector<1x128xf32> to vector<2x128xf32>
    %22 = arith.mulf %16, %21 : vector<2x128xf32>
    %23 = vector.extract_strided_slice %19 {offsets = [1, 0], sizes = [1, 128], strides = [1, 1]} : vector<2x128xf32> to vector<1x128xf32>
    %24 = vector.broadcast %23 : vector<1x128xf32> to vector<2x128xf32>
    %25 = arith.addf %22, %24 : vector<2x128xf32>
    %26 = arith.index_cast %arg1 : i32 to index
    %c0_11 = arith.constant 0 : index
    %c0_12 = arith.constant 0 : index
    %27 = vector.load %arg5[%26, %c0_11, %c0_12] : memref<4x3x128xf32, #tpu.memory_space<vmem>>, vector<1x3x128xf32>
    %28 = vector.shape_cast %27 : vector<1x3x128xf32> to vector<3x128xf32>
    %29 = arith.truncf %25 : vector<2x128xf32> to vector<2x128xbf16>
    %30 = arith.index_cast %arg1 : i32 to index
    %c0_13 = arith.constant 0 : index
    %c0_14 = arith.constant 0 : index
    %31 = vector.load %arg4[%30, %c0_13, %c0_14] : memref<4x128x128xbf16, #tpu.memory_space<vmem>>, vector<1x128x128xbf16>
    %32 = vector.shape_cast %31 : vector<1x128x128xbf16> to vector<128x128xbf16>
    %cst_15 = arith.constant dense<0.000000e+00> : vector<2x128xf32>
    %33 = tpu.matmul %29, %32, %cst_15 {dimension_numbers = #tpu.dot_dimension_numbers<[1], [0], [0], [1], [0, 0, 1, 1], [], []>} : vector<2x128xbf16>, vector<128x128xbf16>, vector<2x128xf32> -> vector<2x128xf32>
    %34 = vector.extract_strided_slice %28 {offsets = [0, 0], sizes = [1, 128], strides = [1, 1]} : vector<3x128xf32> to vector<1x128xf32>
    %35 = vector.broadcast %34 : vector<1x128xf32> to vector<2x128xf32>
    %36 = arith.addf %33, %35 : vector<2x128xf32>
    %cst_16 = arith.constant 0.000000e+00 : f32
    %37 = vector.broadcast %cst_16 : f32 to vector<2x128xf32>
    %38 = arith.cmpf ogt, %36, %37 : vector<2x128xf32>
    %cst_17 = arith.constant 0.000000e+00 : f32
    %39 = vector.broadcast %cst_17 : f32 to vector<2x128xf32>
    %40 = arith.minimumf %36, %39 : vector<2x128xf32>
    %41 = math.exp %40 : vector<2x128xf32>
    %cst_18 = arith.constant 1.000000e+00 : f32
    %42 = vector.broadcast %cst_18 : f32 to vector<2x128xf32>
    %43 = arith.subf %41, %42 : vector<2x128xf32>
    %44 = arith.select %38, %36, %43 : vector<2x128xi1>, vector<2x128xf32>
    %45 = vector.extract_strided_slice %28 {offsets = [1, 0], sizes = [1, 128], strides = [1, 1]} : vector<3x128xf32> to vector<1x128xf32>
    %46 = vector.broadcast %45 : vector<1x128xf32> to vector<2x128xf32>
    %47 = arith.mulf %44, %46 : vector<2x128xf32>
    %48 = vector.extract_strided_slice %28 {offsets = [2, 0], sizes = [1, 128], strides = [1, 1]} : vector<3x128xf32> to vector<1x128xf32>
    %49 = vector.broadcast %48 : vector<1x128xf32> to vector<2x128xf32>
    %50 = arith.addf %47, %49 : vector<2x128xf32>
    %c0_19 = arith.constant 0 : index
    %c0_20 = arith.constant 0 : index
    %c0_21 = arith.constant 0 : index
    %51 = vector.load %arg9[%c0_19, %c0_20, %c0_21] : memref<1x2x128xf32, #tpu.memory_space<vmem>>, vector<1x2x128xf32>
    %52 = vector.shape_cast %51 : vector<1x2x128xf32> to vector<2x128xf32>
    %53 = vector.shape_cast %50 : vector<2x128xf32> to vector<1x2x128xf32>
    tpu.vector_store %arg9[%c0_19, %c0_20, %c0_21], %53 {strides = array<i32>} : memref<1x2x128xf32, #tpu.memory_space<vmem>>, vector<1x2x128xf32>,
    %54 = arith.truncf %50 : vector<2x128xf32> to vector<2x128xbf16>
    %55 = arith.index_cast %arg1 : i32 to index
    %c0_22 = arith.constant 0 : index
    %c0_23 = arith.constant 0 : index
    %56 = vector.load %arg6[%55, %c0_22, %c0_23] : memref<4x128x256xbf16, #tpu.memory_space<vmem>>, vector<1x128x256xbf16>
    %57 = vector.shape_cast %56 : vector<1x128x256xbf16> to vector<128x256xbf16>
    %cst_24 = arith.constant dense<0.000000e+00> : vector<2x256xf32>
    %58 = tpu.matmul %54, %57, %cst_24 {dimension_numbers = #tpu.dot_dimension_numbers<[1], [0], [0], [1], [0, 0, 1, 1], [], []>} : vector<2x128xbf16>, vector<128x256xbf16>, vector<2x256xf32> -> vector<2x256xf32>
    %59 = vector.extract_strided_slice %58 {offsets = [0, 0], sizes = [2, 128], strides = [1, 1]} : vector<2x256xf32> to vector<2x128xf32>
    %60 = arith.index_cast %arg1 : i32 to index
    %c0_25 = arith.constant 0 : index
    %c0_26 = arith.constant 0 : index
    %61 = vector.load %arg7[%60, %c0_25, %c0_26] : memref<4x1x128xf32, #tpu.memory_space<vmem>>, vector<1x1x128xf32>
    %62 = vector.shape_cast %61 : vector<1x1x128xf32> to vector<1x128xf32>
    %63 = vector.broadcast %62 : vector<1x128xf32> to vector<2x128xf32>
    %64 = arith.addf %59, %63 : vector<2x128xf32>
    %c0_27 = arith.constant 0 : index
    %c0_28 = arith.constant 0 : index
    %c0_29 = arith.constant 0 : index
    %65 = vector.load %arg10[%c0_27, %c0_28, %c0_29] : memref<1x2x128xf32, #tpu.memory_space<vmem>>, vector<1x2x128xf32>
    %66 = vector.shape_cast %65 : vector<1x2x128xf32> to vector<2x128xf32>
    %67 = vector.shape_cast %64 : vector<2x128xf32> to vector<1x2x128xf32>
    tpu.vector_store %arg10[%c0_27, %c0_28, %c0_29], %67 {strides = array<i32>} : memref<1x2x128xf32, #tpu.memory_space<vmem>>, vector<1x2x128xf32>,
    %68 = vector.extract_strided_slice %58 {offsets = [0, 128], sizes = [2, 128], strides = [1, 1]} : vector<2x256xf32> to vector<2x128xf32>
    %c0_i32 = arith.constant 0 : i32
    %69 = arith.cmpi eq, %arg1, %c0_i32 : i32
    %70 = arith.extui %69 : i1 to i32
    %c0_i32_30 = arith.constant 0 : i32
    %71 = arith.cmpi ne, %70, %c0_i32_30 : i32
    scf.if %71 {
      %c0_33 = arith.constant 0 : index
      %c0_34 = arith.constant 0 : index
      %75 = vector.load %arg8[%c0_33, %c0_34] : memref<1x128xf32, #tpu.memory_space<vmem>>, vector<1x128xf32>
      %76 = vector.broadcast %75 : vector<1x128xf32> to vector<2x128xf32>
      %77 = arith.addf %68, %76 : vector<2x128xf32>
      %c0_35 = arith.constant 0 : index
      %c0_36 = arith.constant 0 : index
      %78 = vector.load %arg11[%c0_35, %c0_36] : memref<2x128xf32, #tpu.memory_space<vmem>>, vector<2x128xf32>
      tpu.vector_store %arg11[%c0_35, %c0_36], %77 {strides = array<i32>} : memref<2x128xf32, #tpu.memory_space<vmem>>, vector<2x128xf32>,
    } else {
    }
    %c0_i32_31 = arith.constant 0 : i32
    %72 = arith.cmpi ne, %arg1, %c0_i32_31 : i32
    %73 = arith.extui %72 : i1 to i32
    %c0_i32_32 = arith.constant 0 : i32
    %74 = arith.cmpi ne, %73, %c0_i32_32 : i32
    scf.if %74 {
      %c0_33 = arith.constant 0 : index
      %c0_34 = arith.constant 0 : index
      %75 = vector.load %arg11[%c0_33, %c0_34] : memref<2x128xf32, #tpu.memory_space<vmem>>, vector<2x128xf32>
      %76 = arith.addf %75, %68 : vector<2x128xf32>
      %c0_35 = arith.constant 0 : index
      %c0_36 = arith.constant 0 : index
      %77 = vector.load %arg11[%c0_35, %c0_36] : memref<2x128xf32, #tpu.memory_space<vmem>>, vector<2x128xf32>
      tpu.vector_store %arg11[%c0_35, %c0_36], %76 {strides = array<i32>} : memref<2x128xf32, #tpu.memory_space<vmem>>, vector<2x128xf32>,
    } else {
    }
    return
  }
  func.func @transform_0(%arg0: i32, %arg1: i32) -> (i32, i32, i32, i32, i32) {
    %c0_i32 = arith.constant 0 : i32
    %c0_i32_0 = arith.constant 0 : i32
    %c0_i32_1 = arith.constant 0 : i32
    %c0_i32_2 = arith.constant 0 : i32
    return %arg0, %c0_i32, %arg1, %c0_i32_0, %c0_i32_1 : i32, i32, i32, i32, i32
  }
  func.func @transform_1(%arg0: i32, %arg1: i32) -> (i32, i32, i32) {
    %c0_i32 = arith.constant 0 : i32
    %c0_i32_0 = arith.constant 0 : i32
    %c0_i32_1 = arith.constant 0 : i32
    %c0_i32_2 = arith.constant 0 : i32
    return %c0_i32, %c0_i32_0, %c0_i32_1 : i32, i32, i32
  }
  func.func @transform_2(%arg0: i32, %arg1: i32) -> (i32, i32, i32) {
    %c0_i32 = arith.constant 0 : i32
    %c0_i32_0 = arith.constant 0 : i32
    %c0_i32_1 = arith.constant 0 : i32
    %c0_i32_2 = arith.constant 0 : i32
    return %c0_i32, %c0_i32_0, %c0_i32_1 : i32, i32, i32
  }
  func.func @transform_3(%arg0: i32, %arg1: i32) -> (i32, i32, i32) {
    %c0_i32 = arith.constant 0 : i32
    %c0_i32_0 = arith.constant 0 : i32
    %c0_i32_1 = arith.constant 0 : i32
    %c0_i32_2 = arith.constant 0 : i32
    return %c0_i32, %c0_i32_0, %c0_i32_1 : i32, i32, i32
  }
  func.func @transform_4(%arg0: i32, %arg1: i32) -> (i32, i32, i32) {
    %c0_i32 = arith.constant 0 : i32
    %c0_i32_0 = arith.constant 0 : i32
    %c0_i32_1 = arith.constant 0 : i32
    %c0_i32_2 = arith.constant 0 : i32
    return %c0_i32, %c0_i32_0, %c0_i32_1 : i32, i32, i32
  }
  func.func @transform_5(%arg0: i32, %arg1: i32) -> (i32, i32, i32) {
    %c0_i32 = arith.constant 0 : i32
    %c0_i32_0 = arith.constant 0 : i32
    %c0_i32_1 = arith.constant 0 : i32
    %c0_i32_2 = arith.constant 0 : i32
    return %c0_i32, %c0_i32_0, %c0_i32_1 : i32, i32, i32
  }
  func.func @transform_6(%arg0: i32, %arg1: i32) -> (i32, i32) {
    %c0_i32 = arith.constant 0 : i32
    %c0_i32_0 = arith.constant 0 : i32
    %c0_i32_1 = arith.constant 0 : i32
    return %c0_i32, %c0_i32_0 : i32, i32
  }
  func.func @transform_7(%arg0: i32, %arg1: i32) -> (i32, i32, i32) {
    %c0_i32 = arith.constant 0 : i32
    %c0_i32_0 = arith.constant 0 : i32
    return %arg1, %arg0, %c0_i32 : i32, i32, i32
  }
  func.func @transform_8(%arg0: i32, %arg1: i32) -> (i32, i32, i32) {
    %c0_i32 = arith.constant 0 : i32
    %c0_i32_0 = arith.constant 0 : i32
    return %arg1, %arg0, %c0_i32 : i32, i32, i32
  }
  func.func @transform_9(%arg0: i32, %arg1: i32) -> (i32, i32) {
    %c0_i32 = arith.constant 0 : i32
    %c0_i32_0 = arith.constant 0 : i32
    return %arg0, %c0_i32 : i32, i32
  }
}

</mosaic_0001>

<llo_original>
// kernel: pcb_ring_head2_forward.1
$region0: #{pcb_ring_head2_forward.1}
  #allocation0 [shape = 'u32[]', space=smem, size = 0x4, offset = 0x4, fixed_abs, tag = 'smem constant byte address 0x4 - core index']
  #allocation1 [shape = 'u32[144,128]{1,0:T(1,128)}', space=vmem, size = 0x12000, scoped, tag = 'internal scratch']
  %s0 = inlined_call_operand.vmem [shape: f32[2,8,4,2,128], index: 0, kind: input, shape index: {}]
  %s1 = inlined_call_operand.vmem [shape: f32[4,2,128], index: 1, kind: input, shape index: {}]
  %s2 = inlined_call_operand.vmem [shape: bf16[4,128,128], index: 2, kind: input, shape index: {}]
  %s3 = inlined_call_operand.vmem [shape: f32[4,3,128], index: 3, kind: input, shape index: {}]
  %s4 = inlined_call_operand.hbm [shape: bf16[4,128,256], index: 4, kind: input, shape index: {}]
  %s5 = inlined_call_operand.vmem [shape: f32[4,1,128], index: 5, kind: input, shape index: {}]
  %s6 = inlined_call_operand.vmem [shape: f32[1,128], index: 6, kind: input, shape index: {}]
  %s7 = inlined_call_operand.vmem [shape: f32[4,2,128], index: 7, kind: output, shape index: {0}]
  %s8 = inlined_call_operand.vmem [shape: f32[4,2,128], index: 8, kind: output, shape index: {1}]
  %s9 = inlined_call_operand.hbm [shape: f32[2,128], index: 9, kind: output, shape index: {2}]
  %10 = xla_tuple %s7, %s8, %s9
  %s11 = sld [smem:[#allocation0]]
  $region130: #{pcb_ring_head2_forward.1} parent=0
    _
  %s13 = ssub.s32 1, %s11
  %s14 = scalar_select 0, %s13, %s11
  $region1: #{pcb_ring_head2_forward.1} parent=0
    #allocation2 [shape = 'u8[32768]{0}', space=vmem, size = 0x8000, scoped, tag = 'input window, operand 0']
    #allocation3 [shape = 'u8[262144]{0}', space=vmem, size = 0x40000, scoped, tag = 'input window, operand 4, single buffered']
    #allocation4 [shape = 's32[2]{0}', space=sflag, size = 0x8, scoped, tag = 'scoped memory for pcb_ring_head2_forward.1']
    #allocation5 [shape = 's32[2]{0}', space=sflag, size = 0x8, scoped, tag = 'scoped memory for pcb_ring_head2_forward.1']
    #allocation6 [shape = 'u8[1024]{0}', space=vmem, size = 0x400, scoped, tag = 'output window, operand 2, single buffered']
    %15 = vsyncpa [#allocation4], 0
    %16 = vsyncpa [#allocation5], 0
    loop: start=0, step=1, limit=6
    $region2: #{pcb_ring_head2_forward.1} parent=1 // loop_pre_header
      _
    $region3: #{pcb_ring_head2_forward.1} parent=1 // loop_header
      %s18 = sphi 0, %s22
      %p19 = scmp.ge.s32.totalorder %s18, 6
      %s25 = sphi 0, %s37
      %s26 = sphi 0, %s33
      %s27 = sphi 0, %s25
      %s28 = sphi 0, %s26
      %s29 = sphi 0, %s27
      %s30 = sphi 0, %s28
      %s42 = sphi 0, %s44
      %s45 = sphi 0, %s42
      %s46 = sphi 0, %s45
      %s62 = sphi 0, %s46
      %s66 = sphi 0, %s66
      %s68 = sphi 0, %s66
      %s69 = sphi 0, %s68
      %s83 = sphi 0, %s69
      %s87 = sphi 0, %s87
      %s89 = sphi 0, %s87
      %s90 = sphi 0, %s89
      %s104 = sphi 0, %s90
      %s108 = sphi 0, %s108
      %s110 = sphi 0, %s108
      %s111 = sphi 0, %s110
      %s125 = sphi 0, %s111
      %s129 = sphi 0, %s129
      %s131 = sphi 0, %s129
      %s132 = sphi 0, %s131
      %s146 = sphi 0, %s132
      %s150 = sphi 0, %s150
      %s152 = sphi 0, %s150
      %s153 = sphi 0, %s152
      %s167 = sphi 0, %s153
      %s171 = sphi 0, %s171
      %s173 = sphi 0, %s171
      %s174 = sphi 0, %s173
      %s188 = sphi 0, %s174
      %s196 = sphi 0, %s198
      %s199 = sphi 0, %s196
      %s200 = sphi 0, %s199
      %s216 = sphi 0, %s200
      %s224 = sphi 0, %s226
      %s227 = sphi 0, %s224
      %s228 = sphi 0, %s227
      %s244 = sphi 0, %s228
      %s250 = sphi 0, %s252
      %s253 = sphi 0, %s250
      %s254 = sphi 0, %s253
      %s270 = sphi 0, %s254
    $region4: #{pcb_ring_head2_forward.1} parent=1 // loop_header_branch
      %21 = sbr.rel (%p19) target = $region8
    $region5: #{pcb_ring_head2_forward.1} parent=1 // loop_body
      %s23 = ssub.s32 %s18, 1
      %s24 = ssub.s32 %s18, 2
      %s31 = sadd.s32 1, %s26
      %p32 = scmp.ge.s32.totalorder %s31, 4
      %s33 = scalar_select %p32, 0, %s31
      %s34 = sadd.s32 1, %s25
      %s35 = scalar_select %p32, %s34, %s25
      %p36 = scmp.ge.s32.totalorder %s35, 1
      %s37 = scalar_select %p36, 0, %s35
      %s38 = ssub.s32 %s25, %s37
      %s39 = ssub.s32 %s26, %s33
      %s40 = sor.u32 %s38, %s39
      %p41 = scmp.eq.s32.totalorder %s40, 0
      %s43 = sadd.s32 %s42, 1
      %s44 = scalar_select %p41, %s42, %s43
      %p47 = pneg %p41
      %p48 = scmp.eq.s32.totalorder %s18, 3
      %p49 = por %p47, %p48
      %p50 = scmp.ne.s32.totalorder %s42, %s45
      %p51 = scmp.eq.s32.totalorder %s18, 0
      %p52 = por %p50, %p51
      %p53 = scmp.ne.s32.totalorder %s42, %s45
      %p54 = scmp.eq.s32.totalorder %s23, 3
      %p55 = por %p53, %p54
      %p56 = scmp.ne.s32.totalorder %s45, %s46
      %p57 = scmp.eq.s32.totalorder %s23, 0
      %p58 = por %p56, %p57
      %p59 = scmp.ne.s32.totalorder %s45, %s46
      %p60 = scmp.eq.s32.totalorder %s24, 3
      %p61 = por %p59, %p60
      %p63 = scmp.ne.s32.totalorder %s46, %s62
      %p64 = scmp.eq.s32.totalorder %s24, 0
      %p65 = por %p63, %p64
      %s67 = sadd.s32 %s66, 1
      %p70 = scmp.eq.s32.totalorder %s18, 3
      %p71 = scmp.ne.s32.totalorder %s66, %s68
      %p72 = scmp.eq.s32.totalorder %s18, 0
      %p73 = por %p71, %p72
      %p74 = scmp.ne.s32.totalorder %s66, %s68
      %p75 = scmp.eq.s32.totalorder %s23, 3
      %p76 = por %p74, %p75
      %p77 = scmp.ne.s32.totalorder %s68, %s69
      %p78 = scmp.eq.s32.totalorder %s23, 0
      %p79 = por %p77, %p78
      %p80 = scmp.ne.s32.totalorder %s68, %s69
      %p81 = scmp.eq.s32.totalorder %s24, 3
      %p82 = por %p80, %p81
      %p84 = scmp.ne.s32.totalorder %s69, %s83
      %p85 = scmp.eq.s32.totalorder %s24, 0
      %p86 = por %p84, %p85
      %s88 = sadd.s32 %s87, 1
      %p91 = scmp.eq.s32.totalorder %s18, 3
      %p92 = scmp.ne.s32.totalorder %s87, %s89
      %p93 = scmp.eq.s32.totalorder %s18, 0
      %p94 = por %p92, %p93
      %p95 = scmp.ne.s32.totalorder %s87, %s89
      %p96 = scmp.eq.s32.totalorder %s23, 3
      %p97 = por %p95, %p96
      %p98 = scmp.ne.s32.totalorder %s89, %s90
      %p99 = scmp.eq.s32.totalorder %s23, 0
      %p100 = por %p98, %p99
      %p101 = scmp.ne.s32.totalorder %s89, %s90
      %p102 = scmp.eq.s32.totalorder %s24, 3
      %p103 = por %p101, %p102
      %p105 = scmp.ne.s32.totalorder %s90, %s104
      %p106 = scmp.eq.s32.totalorder %s24, 0
      %p107 = por %p105, %p106
      %s109 = sadd.s32 %s108, 1
      %p112 = scmp.eq.s32.totalorder %s18, 3
      %p113 = scmp.ne.s32.totalorder %s108, %s110
      %p114 = scmp.eq.s32.totalorder %s18, 0
      %p115 = por %p113, %p114
      %p116 = scmp.ne.s32.totalorder %s108, %s110
      %p117 = scmp.eq.s32.totalorder %s23, 3
      %p118 = por %p116, %p117
      %p119 = scmp.ne.s32.totalorder %s110, %s111
      %p120 = scmp.eq.s32.totalorder %s23, 0
      %p121 = por %p119, %p120
      %p122 = scmp.ne.s32.totalorder %s110, %s111
      %p123 = scmp.eq.s32.totalorder %s24, 3
      %p124 = por %p122, %p123
      %p126 = scmp.ne.s32.totalorder %s111, %s125
      %p127 = scmp.eq.s32.totalorder %s24, 0
      %p128 = por %p126, %p127
      %s130 = sadd.s32 %s129, 1
      %p133 = scmp.eq.s32.totalorder %s18, 3
      %p134 = scmp.ne.s32.totalorder %s129, %s131
      %p135 = scmp.eq.s32.totalorder %s18, 0
      %p136 = por %p134, %p135
      %p137 = scmp.ne.s32.totalorder %s129, %s131
      %p138 = scmp.eq.s32.totalorder %s23, 3
      %p139 = por %p137, %p138
      %p140 = scmp.ne.s32.totalorder %s131, %s132
      %p141 = scmp.eq.s32.totalorder %s23, 0
      %p142 = por %p140, %p141
      %p143 = scmp.ne.s32.totalorder %s131, %s132
      %p144 = scmp.eq.s32.totalorder %s24, 3
      %p145 = por %p143, %p144
      %p147 = scmp.ne.s32.totalorder %s132, %s146
      %p148 = scmp.eq.s32.totalorder %s24, 0
      %p149 = por %p147, %p148
      %s151 = sadd.s32 %s150, 1
      %p154 = scmp.eq.s32.totalorder %s18, 3
      %p155 = scmp.ne.s32.totalorder %s150, %s152
      %p156 = scmp.eq.s32.totalorder %s18, 0
      %p157 = por %p155, %p156
      %p158 = scmp.ne.s32.totalorder %s150, %s152
      %p159 = scmp.eq.s32.totalorder %s23, 3
      %p160 = por %p158, %p159
      %p161 = scmp.ne.s32.totalorder %s152, %s153
      %p162 = scmp.eq.s32.totalorder %s23, 0
      %p163 = por %p161, %p162
      %p164 = scmp.ne.s32.totalorder %s152, %s153
      %p165 = scmp.eq.s32.totalorder %s24, 3
      %p166 = por %p164, %p165
      %p168 = scmp.ne.s32.totalorder %s153, %s167
      %p169 = scmp.eq.s32.totalorder %s24, 0
      %p170 = por %p168, %p169
      %s172 = sadd.s32 %s171, 1
      %p175 = scmp.eq.s32.totalorder %s18, 3
      %p176 = scmp.ne.s32.totalorder %s171, %s173
      %p177 = scmp.eq.s32.totalorder %s18, 0
      %p178 = por %p176, %p177
      %p179 = scmp.ne.s32.totalorder %s171, %s173
      %p180 = scmp.eq.s32.totalorder %s23, 3
      %p181 = por %p179, %p180
      %p182 = scmp.ne.s32.totalorder %s173, %s174
      %p183 = scmp.eq.s32.totalorder %s23, 0
      %p184 = por %p182, %p183
      %p185 = scmp.ne.s32.totalorder %s173, %s174
      %p186 = scmp.eq.s32.totalorder %s24, 3
      %p187 = por %p185, %p186
      %p189 = scmp.ne.s32.totalorder %s174, %s188
      %p190 = scmp.eq.s32.totalorder %s24, 0
      %p191 = por %p189, %p190
      %s192 = ssub.s32 %s26, %s33
      %s193 = ssub.s32 %s25, %s37
      %s194 = sor.u32 %s192, %s193
      %p195 = scmp.eq.s32.totalorder %s194, 0
      %s197 = sadd.s32 %s196, 1
      %s198 = scalar_select %p195, %s196, %s197
      %p201 = pneg %p195
      %p202 = scmp.eq.s32.totalorder %s18, 3
      %p203 = por %p201, %p202
      %p204 = scmp.ne.s32.totalorder %s196, %s199
      %p205 = scmp.eq.s32.totalorder %s18, 0
      %p206 = por %p204, %p205
      %p207 = scmp.ne.s32.totalorder %s196, %s199
      %p208 = scmp.eq.s32.totalorder %s23, 3
      %p209 = por %p207, %p208
      %p210 = scmp.ne.s32.totalorder %s199, %s200
      %p211 = scmp.eq.s32.totalorder %s23, 0
      %p212 = por %p210, %p211
      %p213 = scmp.ne.s32.totalorder %s199, %s200
      %p214 = scmp.eq.s32.totalorder %s24, 3
      %p215 = por %p213, %p214
      %p217 = scmp.ne.s32.totalorder %s200, %s216
      %p218 = scmp.eq.s32.totalorder %s24, 0
      %p219 = por %p217, %p218
      %s220 = ssub.s32 %s26, %s33
      %s221 = ssub.s32 %s25, %s37
      %s222 = sor.u32 %s220, %s221
      %p223 = scmp.eq.s32.totalorder %s222, 0
      %s225 = sadd.s32 %s224, 1
      %s226 = scalar_select %p223, %s224, %s225
      %p229 = pneg %p223
      %p230 = scmp.eq.s32.totalorder %s18, 3
      %p231 = por %p229, %p230
      %p232 = scmp.ne.s32.totalorder %s224, %s227
      %p233 = scmp.eq.s32.totalorder %s18, 0
      %p234 = por %p232, %p233
      %p235 = scmp.ne.s32.totalorder %s224, %s227
      %p236 = scmp.eq.s32.totalorder %s23, 3
      %p237 = por %p235, %p236
      %p238 = scmp.ne.s32.totalorder %s227, %s228
      %p239 = scmp.eq.s32.totalorder %s23, 0
      %p240 = por %p238, %p239
      %p241 = scmp.ne.s32.totalorder %s227, %s228
      %p242 = scmp.eq.s32.totalorder %s24, 3
      %p243 = por %p241, %p242
      %p245 = scmp.ne.s32.totalorder %s228, %s244
      %p246 = scmp.eq.s32.totalorder %s24, 0
      %p247 = por %p245, %p246
      %s248 = ssub.s32 %s25, %s37
      %p249 = scmp.eq.s32.totalorder %s248, 0
      %s251 = sadd.s32 %s250, 1
      %s252 = scalar_select %p249, %s250, %s251
      %p255 = pneg %p249
      %p256 = scmp.eq.s32.totalorder %s18, 3
      %p257 = por %p255, %p256
      %p258 = scmp.ne.s32.totalorder %s250, %s253
      %p259 = scmp.eq.s32.totalorder %s18, 0
      %p260 = por %p258, %p259
      %p261 = scmp.ne.s32.totalorder %s250, %s253
      %p262 = scmp.eq.s32.totalorder %s23, 3
      %p263 = por %p261, %p262
      %p264 = scmp.ne.s32.totalorder %s253, %s254
      %p265 = scmp.eq.s32.totalorder %s23, 0
      %p266 = por %p264, %p265
      %p267 = scmp.ne.s32.totalorder %s253, %s254
      %p268 = scmp.eq.s32.totalorder %s24, 3
      %p269 = por %p267, %p268
      %p271 = scmp.ne.s32.totalorder %s254, %s270
      %p272 = scmp.eq.s32.totalorder %s24, 0
      %p273 = por %p271, %p272
      %p274 = scmp.le.s32.totalorder 1, %s18
      %p275 = scmp.lt.s32.totalorder %s18, 5
      %p276 = pnand %p274, %p275
      %p277 = pneg %p276
      // Predicated region
      $region9: #{pcb_ring_head2_forward.1} parent=5 // pred_check
        _
      $region10: #{pcb_ring_head2_forward.1} parent=5 // pred_check_branch
        %279 = sbr.rel (%p276) target = $region12
      $region11: #{pcb_ring_head2_forward.1} parent=5 // pred_region
        %s280 = ssub.s32 %s18, 1
        // Predicated region
        $region13: #{pcb_ring_head2_forward.1} parent=11 // pred_check
          %p281 = pneg %p79
        $region14: #{pcb_ring_head2_forward.1} parent=11 // pred_check_branch
          %283 = sbr.rel (%p281) target = $region16
        $region15: #{pcb_ring_head2_forward.1} parent=11 // pred_region
          _
        $region16: #{pcb_ring_head2_forward.1} parent=11 // pred_fallthru
          _
        // Predicated region
        $region17: #{pcb_ring_head2_forward.1} parent=11 // pred_check
          %p284 = pneg %p100
        $region18: #{pcb_ring_head2_forward.1} parent=11 // pred_check_branch
          %286 = sbr.rel (%p284) target = $region20
        $region19: #{pcb_ring_head2_forward.1} parent=11 // pred_region
          _
        $region20: #{pcb_ring_head2_forward.1} parent=11 // pred_fallthru
          _
        // Predicated region
        $region21: #{pcb_ring_head2_forward.1} parent=11 // pred_check
          %p287 = pneg %p121
        $region22: #{pcb_ring_head2_forward.1} parent=11 // pred_check_branch
          %289 = sbr.rel (%p287) target = $region24
        $region23: #{pcb_ring_head2_forward.1} parent=11 // pred_region
          _
        $region24: #{pcb_ring_head2_forward.1} parent=11 // pred_fallthru
          _
        // Predicated region
        $region25: #{pcb_ring_head2_forward.1} parent=11 // pred_check
          %p290 = pneg %p142
        $region26: #{pcb_ring_head2_forward.1} parent=11 // pred_check_branch
          %292 = sbr.rel (%p290) target = $region28
        $region27: #{pcb_ring_head2_forward.1} parent=11 // pred_region
          %s294 = ssub.s32 8192, 8192
          %295 = vsyncadd [#allocation4], %s294
          %s296 = sshll.u32 [#allocation3], 4
          %s297 = int_to_ptr.vmem [resolvable:$true] %s296
          %302 = dma.hbm_to_vmem [thread:$0]  %s4, 8192, %s297, [#allocation4], 128, 128, 8
        $region28: #{pcb_ring_head2_forward.1} parent=11 // pred_fallthru
          _
        // Predicated region
        $region29: #{pcb_ring_head2_forward.1} parent=11 // pred_check
          %p303 = pneg %p163
        $region30: #{pcb_ring_head2_forward.1} parent=11 // pred_check_branch
          %305 = sbr.rel (%p303) target = $region32
        $region31: #{pcb_ring_head2_forward.1} parent=11 // pred_region
          _
        $region32: #{pcb_ring_head2_forward.1} parent=11 // pred_fallthru
          _
        // Predicated region
        $region33: #{pcb_ring_head2_forward.1} parent=11 // pred_check
          %p306 = pneg %p184
        $region34: #{pcb_ring_head2_forward.1} parent=11 // pred_check_branch
          %308 = sbr.rel (%p306) target = $region36
        $region35: #{pcb_ring_head2_forward.1} parent=11 // pred_region
          _
        $region36: #{pcb_ring_head2_forward.1} parent=11 // pred_fallthru
          _
      $region12: #{pcb_ring_head2_forward.1} parent=5 // pred_fallthru
        _
      %p309 = scmp.lt.s32.totalorder %s18, 4
      // Predicated region
      $region37: #{pcb_ring_head2_forward.1} parent=5 // pred_check
        %p310 = pneg %p309
      $region38: #{pcb_ring_head2_forward.1} parent=5 // pred_check_branch
        %312 = sbr.rel (%p310) target = $region40
      $region39: #{pcb_ring_head2_forward.1} parent=5 // pred_region
        // Predicated region
        $region41: #{pcb_ring_head2_forward.1} parent=39 // pred_check
          %p313 = pneg %p52
        $region42: #{pcb_ring_head2_forward.1} parent=39 // pred_check_branch
          %315 = sbr.rel (%p313) target = $region44
        $region43: #{pcb_ring_head2_forward.1} parent=39 // pred_region
          %s316 = sand.u32 %s42, 1
          %s317 = sand.u32 %s42, 1
          %s318 = smul.addr %s317, 32
          %s319 = scalar_lea.vmem [#allocation2], %s318
          %s320 = smul.u32 2, %s25
          %s321 = smul.addr %s320, 32
          %s322 = sadd.s32 %s26, %s321
          %s323 = smul.addr %s322, 2
          %s324 = scalar_lea.vmem %s0, %s323
          // Predicated region
          $region45: #{pcb_ring_head2_forward.1} parent=43 // pred_check
            _
          $region46: #{pcb_ring_head2_forward.1} parent=43 // pred_check_branch
            %326 = sbr.rel (0) target = $region48
          $region47: #{pcb_ring_head2_forward.1} parent=43 // pred_region
            // Predicated region
            $region49: #{pcb_ring_head2_forward.1} parent=47 // pred_check
              _
            $region50: #{pcb_ring_head2_forward.1} parent=47 // pred_check_branch
              %328 = sbr.rel target = $region52
            $region51: #{pcb_ring_head2_forward.1} parent=47 // pred_region
              // Predicated region
              $region64: #{pcb_ring_head2_forward.1} parent=51 // pred_check
                _
              $region65: #{pcb_ring_head2_forward.1} parent=51 // pred_check_branch
                %374 = sbr.rel (0) target = $region67
              $region66: #{pcb_ring_head2_forward.1} parent=51 // pred_region
                loop: start=0, step=1, limit=1
                $region68: #{pcb_ring_head2_forward.1} parent=66 // loop_pre_header
                  _
                $region69: #{pcb_ring_head2_forward.1} parent=66 // loop_header
                  %s376 = sphi 0, %s380
                  %p377 = scmp.ge.s32.totalorder %s376, 1
                  %s381 = sphi %s324, %s324
                  %s382 = sphi %s319, %s319
                $region70: #{pcb_ring_head2_forward.1} parent=66 // loop_header_branch
                  %379 = sbr.rel (%p377) target = $region74
                $region71: #{pcb_ring_head2_forward.1} parent=66 // loop_body
                  _
                $region72: #{pcb_ring_head2_forward.1} parent=66 // loop_footer
                  %s380 = sadd.s32 1, %s376
                $region73: #{pcb_ring_head2_forward.1} parent=66 // loop_footer_branch
                  %375 = sbr.rel target = $region69
                $region74: #{pcb_ring_head2_forward.1} parent=66 // loop_exit
                  _
                %s384 = ssub.s32 4, 1
                loop: start=0, step=1, limit=1
                $region75: #{pcb_ring_head2_forward.1} parent=66 // loop_pre_header
                  _
                $region76: #{pcb_ring_head2_forward.1} parent=66 // loop_header
                  %s386 = sphi 0, %s390
                  %p387 = scmp.ge.s32.totalorder %s386, 1
                  %s391 = sphi %s324, %s324
                  %s392 = sphi %s319, %s319
                $region77: #{pcb_ring_head2_forward.1} parent=66 // loop_header_branch
                  %389 = sbr.rel (%p387) target = $region81
                $region78: #{pcb_ring_head2_forward.1} parent=66 // loop_body
                  %v393 = vld [vmem:[%s391] sm:%s384]
                  %394 = vst [vmem:[%s392] sm:%s384] %v393
                  %v395 = vld [vmem:[%s391 + $0x8] sm:%s384]
                  %396 = vst [vmem:[%s392 + $0x2] sm:%s384] %v395
                  %v397 = vld [vmem:[%s391 + $0x10] sm:%s384]
                  %398 = vst [vmem:[%s392 + $0x4] sm:%s384] %v397
                  %v399 = vld [vmem:[%s391 + $0x18] sm:%s384]
                  %400 = vst [vmem:[%s392 + $0x6] sm:%s384] %v399
                  %v401 = vld [vmem:[%s391 + $0x20] sm:%s384]
                  %402 = vst [vmem:[%s392 + $0x8] sm:%s384] %v401
                  %v403 = vld [vmem:[%s391 + $0x28] sm:%s384]
                  %404 = vst [vmem:[%s392 + $0xa] sm:%s384] %v403
                  %v405 = vld [vmem:[%s391 + $0x30] sm:%s384]
                  %406 = vst [vmem:[%s392 + $0xc] sm:%s384] %v405
                  %v407 = vld [vmem:[%s391 + $0x38] sm:%s384]
                  %408 = vst [vmem:[%s392 + $0xe] sm:%s384] %v407
                  %v409 = vld [vmem:[%s391 + $0x40] sm:%s384]
                  %410 = vst [vmem:[%s392 + $0x10] sm:%s384] %v409
                  %v411 = vld [vmem:[%s391 + $0x48] sm:%s384]
                  %412 = vst [vmem:[%s392 + $0x12] sm:%s384] %v411
                  %v413 = vld [vmem:[%s391 + $0x50] sm:%s384]
                  %414 = vst [vmem:[%s392 + $0x14] sm:%s384] %v413
                  %v415 = vld [vmem:[%s391 + $0x58] sm:%s384]
                  %416 = vst [vmem:[%s392 + $0x16] sm:%s384] %v415
                  %v417 = vld [vmem:[%s391 + $0x60] sm:%s384]
                  %418 = vst [vmem:[%s392 + $0x18] sm:%s384] %v417
                  %v419 = vld [vmem:[%s391 + $0x68] sm:%s384]
                  %420 = vst [vmem:[%s392 + $0x1a] sm:%s384] %v419
                  %v421 = vld [vmem:[%s391 + $0x70] sm:%s384]
                  %422 = vst [vmem:[%s392 + $0x1c] sm:%s384] %v421
                  %v423 = vld [vmem:[%s391 + $0x78] sm:%s384]
                  %424 = vst [vmem:[%s392 + $0x1e] sm:%s384] %v423
                $region79: #{pcb_ring_head2_forward.1} parent=66 // loop_footer
                  %s390 = sadd.s32 1, %s386
                $region80: #{pcb_ring_head2_forward.1} parent=66 // loop_footer_branch
                  %385 = sbr.rel target = $region76
                $region81: #{pcb_ring_head2_forward.1} parent=66 // loop_exit
                  _
              $region67: #{pcb_ring_head2_forward.1} parent=51 // pred_fallthru
                _
            $region52: #{pcb_ring_head2_forward.1} parent=47 // pred_fallthru
              _
            // Predicated region
            $region53: #{pcb_ring_head2_forward.1} parent=47 // pred_check
              _
            $region54: #{pcb_ring_head2_forward.1} parent=47 // pred_check_branch
              %330 = sbr.rel (0) target = $region56
            $region55: #{pcb_ring_head2_forward.1} parent=47 // pred_region
              %s332 = ssub.s32 4, 1
              loop: start=0, step=1, limit=1
              $region57: #{pcb_ring_head2_forward.1} parent=55 // loop_pre_header
                _
              $region58: #{pcb_ring_head2_forward.1} parent=55 // loop_header
                %s334 = sphi 0, %s338
                %p335 = scmp.ge.s32.totalorder %s334, 1
                %s339 = sphi %s324, %s324
                %s340 = sphi %s319, %s319
              $region59: #{pcb_ring_head2_forward.1} parent=55 // loop_header_branch
                %337 = sbr.rel (%p335) target = $region63
              $region60: #{pcb_ring_head2_forward.1} parent=55 // loop_body
                %v341 = vld [vmem:[%s339] sm:%s332]
                %342 = vst [vmem:[%s340] sm:%s332] %v341
                %v343 = vld [vmem:[%s339 + $0x8] sm:%s332]
                %344 = vst [vmem:[%s340 + $0x2] sm:%s332] %v343
                %v345 = vld [vmem:[%s339 + $0x10] sm:%s332]
                %346 = vst [vmem:[%s340 + $0x4] sm:%s332] %v345
                %v347 = vld [vmem:[%s339 + $0x18] sm:%s332]
                %348 = vst [vmem:[%s340 + $0x6] sm:%s332] %v347
                %v349 = vld [vmem:[%s339 + $0x20] sm:%s332]
                %350 = vst [vmem:[%s340 + $0x8] sm:%s332] %v349
                %v351 = vld [vmem:[%s339 + $0x28] sm:%s332]
                %352 = vst [vmem:[%s340 + $0xa] sm:%s332] %v351
                %v353 = vld [vmem:[%s339 + $0x30] sm:%s332]
                %354 = vst [vmem:[%s340 + $0xc] sm:%s332] %v353
                %v355 = vld [vmem:[%s339 + $0x38] sm:%s332]
                %356 = vst [vmem:[%s340 + $0xe] sm:%s332] %v355
                %v357 = vld [vmem:[%s339 + $0x40] sm:%s332]
                %358 = vst [vmem:[%s340 + $0x10] sm:%s332] %v357
                %v359 = vld [vmem:[%s339 + $0x48] sm:%s332]
                %360 = vst [vmem:[%s340 + $0x12] sm:%s332] %v359
                %v361 = vld [vmem:[%s339 + $0x50] sm:%s332]
                %362 = vst [vmem:[%s340 + $0x14] sm:%s332] %v361
                %v363 = vld [vmem:[%s339 + $0x58] sm:%s332]
                %364 = vst [vmem:[%s340 + $0x16] sm:%s332] %v363
                %v365 = vld [vmem:[%s339 + $0x60] sm:%s332]
                %366 = vst [vmem:[%s340 + $0x18] sm:%s332] %v365
                %v367 = vld [vmem:[%s339 + $0x68] sm:%s332]
                %368 = vst [vmem:[%s340 + $0x1a] sm:%s332] %v367
                %v369 = vld [vmem:[%s339 + $0x70] sm:%s332]
                %370 = vst [vmem:[%s340 + $0x1c] sm:%s332] %v369
                %v371 = vld [vmem:[%s339 + $0x78] sm:%s332]
                %372 = vst [vmem:[%s340 + $0x1e] sm:%s332] %v371
              $region61: #{pcb_ring_head2_forward.1} parent=55 // loop_footer
                %s338 = sadd.s32 1, %s334
              $region62: #{pcb_ring_head2_forward.1} parent=55 // loop_footer_branch
                %333 = sbr.rel target = $region58
              $region63: #{pcb_ring_head2_forward.1} parent=55 // loop_exit
                _
            $region56: #{pcb_ring_head2_forward.1} parent=47 // pred_fallthru
              _
          $region48: #{pcb_ring_head2_forward.1} parent=43 // pred_fallthru
            _
          %425 = vnop
        $region44: #{pcb_ring_head2_forward.1} parent=39 // pred_fallthru
          _
      $region40: #{pcb_ring_head2_forward.1} parent=5 // pred_fallthru
        _
      %p426 = scmp.le.s32.totalorder 1, %s18
      %p427 = scmp.lt.s32.totalorder %s18, 5
      %p428 = pnand %p426, %p427
      %p429 = pneg %p428
      // Predicated region
      $region82: #{pcb_ring_head2_forward.1} parent=5 // pred_check
        _
      $region83: #{pcb_ring_head2_forward.1} parent=5 // pred_check_branch
        %431 = sbr.rel (%p428) target = $region85
      $region84: #{pcb_ring_head2_forward.1} parent=5 // pred_region
        %s432 = ssub.s32 %s18, 1
        %s433 = sand.u32 %s45, 1
        %s434 = sand.u32 %s45, 1
        %s435 = smul.addr %s434, 32
        %s436 = scalar_lea.vmem [#allocation2], %s435
        // Predicated region
        $region86: #{pcb_ring_head2_forward.1} parent=84 // pred_check
          %p437 = pneg %p58
        $region87: #{pcb_ring_head2_forward.1} parent=84 // pred_check_branch
          %439 = sbr.rel (%p437) target = $region89
        $region88: #{pcb_ring_head2_forward.1} parent=84 // pred_region
          _
        $region89: #{pcb_ring_head2_forward.1} parent=84 // pred_fallthru
          _
        // Predicated region
        $region90: #{pcb_ring_head2_forward.1} parent=84 // pred_check
          %p440 = pneg %p142
        $region91: #{pcb_ring_head2_forward.1} parent=84 // pred_check_branch
          %442 = sbr.rel (%p440) target = $region93
        $region92: #{pcb_ring_head2_forward.1} parent=84 // pred_region
          %443 = dma.done [#allocation4], 8192
        $region93: #{pcb_ring_head2_forward.1} parent=84 // pred_fallthru
          _
        %s444 = sand.u32 %s45, 1
        %s445 = sand.u32 %s45, 1
        %s446 = smul.addr %s445, 32
        %s447 = scalar_lea.vmem [#allocation2], %s446
        %p448 = pneg %p58
        %p449 = pneg %p55
        %p450 = pneg %p79
        %p451 = pneg %p76
        %p452 = pneg %p100
        %p453 = pneg %p97
        %p454 = pneg %p121
        %p455 = pneg %p118
        %p456 = pneg %p142
        %p457 = pneg %p139
        %p458 = pneg %p163
        %p459 = pneg %p160
        %p460 = pneg %p184
        %p461 = pneg %p181
        %p462 = pneg %p212
        %p463 = pneg %p209
        %p464 = scmp.lt.s32.totalorder %s28, 3
        %s465 = scalar_select %p464, %s28, 3
        %p466 = scmp.lt.s32.totalorder %s27, 0
        %s467 = scalar_select %p466, %s27, 0
        %s468 = sadd.s32 %s467, %s465
        %s469 = smul.addr %s468, 2
        %s470 = scalar_lea.vmem %s7, %s469
        %p471 = pneg %p240
        %p472 = pneg %p237
        %p473 = scmp.lt.s32.totalorder %s28, 3
        %s474 = scalar_select %p473, %s28, 3
        %p475 = scmp.lt.s32.totalorder %s27, 0
        %s476 = scalar_select %p475, %s27, 0
        %s477 = sadd.s32 %s476, %s474
        %s478 = smul.addr %s477, 2
        %s479 = scalar_lea.vmem %s8, %s478
        %p480 = pneg %p266
        %p481 = pneg %p263
        %s482 = smul.u32 2, %s27
        %p483 = scmp.lt.s32.totalorder %s28, 3
        %s484 = scalar_select %p483, %s28, 3
        %p485 = scmp.lt.s32.totalorder %s27, 0
        %s486 = scalar_select %p485, %s27, 0
        %s487 = sadd.s32 %s486, %s484
        %s488 = smul.addr %s487, 2
        %s489 = scalar_lea.vmem %s7, %s488
        %p490 = scmp.lt.s32.totalorder %s28, 3
        %s491 = scalar_select %p490, %s28, 3
        %p492 = scmp.lt.s32.totalorder %s27, 0
        %s493 = scalar_select %p492, %s27, 0
        %s494 = sadd.s32 %s493, %s491
        %s495 = smul.addr %s494, 2
        %s496 = scalar_lea.vmem %s8, %s495
        %v498 = vld [vmem:[%s436] sm:$0x3]
        %v499 = vld [vmem:[%s436 + $0x2] sm:$0x3]
        %v500 = vld [vmem:[%s436 + $0x4] sm:$0x3]
        %v501 = vld [vmem:[%s436 + $0x6] sm:$0x3]
        %v502 = vld [vmem:[%s436 + $0x8] sm:$0x3]
        %v503 = vld [vmem:[%s436 + $0xa] sm:$0x3]
        %v504 = vld [vmem:[%s436 + $0xc] sm:$0x3]
        %v505 = vld [vmem:[%s436 + $0xe] sm:$0x3]
        %v506 = vld [vmem:[%s436 + $0x10] sm:$0x3]
        %v507 = vld [vmem:[%s436 + $0x12] sm:$0x3]
        %v508 = vld [vmem:[%s436 + $0x14] sm:$0x3]
        %v509 = vld [vmem:[%s436 + $0x16] sm:$0x3]
        %v510 = vld [vmem:[%s436 + $0x18] sm:$0x3]
        %v511 = vld [vmem:[%s436 + $0x1a] sm:$0x3]
        %v512 = vld [vmem:[%s436 + $0x1c] sm:$0x3]
        %v513 = vld [vmem:[%s436 + $0x1e] sm:$0x3]
        %v514 = vmax.f32 %v498, 1e-06
        %v515 = vmax.f32 %v499, 1e-06
        %v516 = vmax.f32 %v500, 1e-06
        %v517 = vmax.f32 %v501, 1e-06
        %v518 = vmax.f32 %v502, 1e-06
        %v519 = vmax.f32 %v503, 1e-06
        %v520 = vmax.f32 %v504, 1e-06
        %v521 = vmax.f32 %v505, 1e-06
        %v522 = vmax.f32 %v506, 1e-06
        %v523 = vmax.f32 %v507, 1e-06
        %v524 = vmax.f32 %v508, 1e-06
        %v525 = vmax.f32 %v509, 1e-06
        %v526 = vmax.f32 %v510, 1e-06
        %v527 = vmax.f32 %v511, 1e-06
        %v528 = vmax.f32 %v512, 1e-06
        %v529 = vmax.f32 %v513, 1e-06
        %v530 = vmin.f32 %v514, 10000.0
        %v531 = vmin.f32 %v515, 10000.0
        %v532 = vmin.f32 %v516, 10000.0
        %v533 = vmin.f32 %v517, 10000.0
        %v534 = vmin.f32 %v518, 10000.0
        %v535 = vmin.f32 %v519, 10000.0
        %v536 = vmin.f32 %v520, 10000.0
        %v537 = vmin.f32 %v521, 10000.0
        %v538 = vmin.f32 %v522, 10000.0
        %v539 = vmin.f32 %v523, 10000.0
        %v540 = vmin.f32 %v524, 10000.0
        %v541 = vmin.f32 %v525, 10000.0
        %v542 = vmin.f32 %v526, 10000.0
        %v543 = vmin.f32 %v527, 10000.0
        %v544 = vmin.f32 %v528, 10000.0
        %v545 = vmin.f32 %v529, 10000.0
        %v546 = vlog2.pop %v530
        %v547 = vmul.f32 %v546, 0.6931472
        %v548 = vlog2.pop %v531
        %v549 = vmul.f32 %v548, 0.6931472
        %v550 = vlog2.pop %v532
        %v551 = vmul.f32 %v550, 0.6931472
        %v552 = vlog2.pop %v533
        %v553 = vmul.f32 %v552, 0.6931472
        %v554 = vlog2.pop %v534
        %v555 = vmul.f32 %v554, 0.6931472
        %v556 = vlog2.pop %v535
        %v557 = vmul.f32 %v556, 0.6931472
        %v558 = vlog2.pop %v536
        %v559 = vmul.f32 %v558, 0.6931472
        %v560 = vlog2.pop %v537
        %v561 = vmul.f32 %v560, 0.6931472
        %v562 = vlog2.pop %v538
        %v563 = vmul.f32 %v562, 0.6931472
        %v564 = vlog2.pop %v539
        %v565 = vmul.f32 %v564, 0.6931472
        %v566 = vlog2.pop %v540
        %v567 = vmul.f32 %v566, 0.6931472
        %v568 = vlog2.pop %v541
        %v569 = vmul.f32 %v568, 0.6931472
        %v570 = vlog2.pop %v542
        %v571 = vmul.f32 %v570, 0.6931472
        %v572 = vlog2.pop %v543
        %v573 = vmul.f32 %v572, 0.6931472
        %v574 = vlog2.pop %v544
        %v575 = vmul.f32 %v574, 0.6931472
        %v576 = vlog2.pop %v545
        %v577 = vmul.f32 %v576, 0.6931472
        %v578 = vmul.f32 %v547, 3.74
        %v579 = vmul.f32 %v549, 3.74
        %v580 = vmul.f32 %v551, 3.74
        %v581 = vmul.f32 %v553, 3.74
        %v582 = vmul.f32 %v555, 3.74
        %v583 = vmul.f32 %v557, 3.74
        %v584 = vmul.f32 %v559, 3.74
        %v585 = vmul.f32 %v561, 3.74
        %v586 = vmul.f32 %v563, 3.74
        %v587 = vmul.f32 %v565, 3.74
        %v588 = vmul.f32 %v567, 3.74
        %v589 = vmul.f32 %v569, 3.74
        %v590 = vmul.f32 %v571, 3.74
        %v591 = vmul.f32 %v573, 3.74
        %v592 = vmul.f32 %v575, 3.74
        %v593 = vmul.f32 %v577, 3.74
        %v594 = vmul.f32 %v578, 1.442695
        %v595 = vpow.pop %v594
        %v596 = vmul.f32 %v579, 1.442695
        %v597 = vpow.pop %v596
        %v598 = vmul.f32 %v580, 1.442695
        %v599 = vpow.pop %v598
        %v600 = vmul.f32 %v581, 1.442695
        %v601 = vpow.pop %v600
        %v602 = vmul.f32 %v582, 1.442695
        %v603 = vpow.pop %v602
        %v604 = vmul.f32 %v583, 1.442695
        %v605 = vpow.pop %v604
        %v606 = vmul.f32 %v584, 1.442695
        %v607 = vpow.pop %v606
        %v608 = vmul.f32 %v585, 1.442695
        %v609 = vpow.pop %v608
        %v610 = vmul.f32 %v586, 1.442695
        %v611 = vpow.pop %v610
        %v612 = vmul.f32 %v587, 1.442695
        %v613 = vpow.pop %v612
        %v614 = vmul.f32 %v588, 1.442695
        %v615 = vpow.pop %v614
        %v616 = vmul.f32 %v589, 1.442695
        %v617 = vpow.pop %v616
        %v618 = vmul.f32 %v590, 1.442695
        %v619 = vpow.pop %v618
        %v620 = vmul.f32 %v591, 1.442695
        %v621 = vpow.pop %v620
        %v622 = vmul.f32 %v592, 1.442695
        %v623 = vpow.pop %v622
        %v624 = vmul.f32 %v593, 1.442695
        %v625 = vpow.pop %v624
        %vm626 = vcmask 1041408
        %v627 = vsel %vm626, %v595, 0.0
        %v628 = vsel %vm626, %v597, 0.0
        %v629 = vadd.f32 %v627, %v628
        %v630 = vsel %vm626, %v599, 0.0
        %v631 = vadd.f32 %v629, %v630
        %v632 = vsel %vm626, %v601, 0.0
        %v633 = vadd.f32 %v631, %v632
        %v634 = vsel %vm626, %v603, 0.0
        %v635 = vadd.f32 %v633, %v634
        %v636 = vsel %vm626, %v605, 0.0
        %v637 = vadd.f32 %v635, %v636
        %v638 = vsel %vm626, %v607, 0.0
        %v639 = vadd.f32 %v637, %v638
        %v640 = vsel %vm626, %v609, 0.0
        %v641 = vadd.f32 %v639, %v640
        %v642 = vrot.slane %v641, 4
        %v643 = vadd.f32 %v641, %v642
        %v644 = vrot.slane %v643, 2
        %v645 = vadd.f32 %v643, %v644
        %v646 = vrot.slane %v645, 1
        %v647 = vadd.f32 %v645, %v646
        %v648 = vsel %vm626, %v611, 0.0
        %v649 = vsel %vm626, %v613, 0.0
        %v650 = vadd.f32 %v648, %v649
        %v651 = vsel %vm626, %v615, 0.0
        %v652 = vadd.f32 %v650, %v651
        %v653 = vsel %vm626, %v617, 0.0
        %v654 = vadd.f32 %v652, %v653
        %v655 = vsel %vm626, %v619, 0.0
        %v656 = vadd.f32 %v654, %v655
        %v657 = vsel %vm626, %v621, 0.0
        %v658 = vadd.f32 %v656, %v657
        %v659 = vsel %vm626, %v623, 0.0
        %v660 = vadd.f32 %v658, %v659
        %v661 = vsel %vm626, %v625, 0.0
        %v662 = vadd.f32 %v660, %v661
        %v663 = vrot.slane %v662, 4
        %v664 = vadd.f32 %v662, %v663
        %v665 = vrot.slane %v664, 2
        %v666 = vadd.f32 %v664, %v665
        %v667 = vrot.slane %v666, 1
        %v668 = vadd.f32 %v666, %v667
        %v669 = vrcp.pop 16.0
        %v670 = vmul.f32 %v647, %v669
        %v671 = vmul.f32 %v668, %v669
        %v672 = vlog2.pop %v670
        %v673 = vmul.f32 %v672, 0.6931472
        %v674 = vlog2.pop %v671
        %v675 = vmul.f32 %v674, 0.6931472
        %v676 = vrcp.pop 3.74
        %v677 = vmul.f32 %v673, %v676
        %v678 = vmul.f32 %v675, %v676
        %v679 = vmul.f32 %v677, 1.442695
        %v680 = vpow.pop %v679
        %v681 = vmul.f32 %v678, 1.442695
        %v682 = vpow.pop %v681
        %s683 = smul.u32 %s28, 2
        %s684 = scalar_lea.vmem %s1, %s683
        %v685 = vld [vmem:[%s684] sm:$0x3]
        %v686 = vlaneseq
        %v687 = vshrl.u32 %v686, 7
        %v688 = vsub.s32 0, %v687
        %v689 = vrot.slane %v685, %v688
        %v690 = vmul.f32 %v680, %v689
        %v691 = vmul.f32 %v682, %v689
        %v692 = vlaneseq
        %v693 = vshrl.u32 %v692, 7
        %v694 = vsub.s32 1, %v693
        %v695 = vrot.slane %v685, %v694
        %v696 = vadd.f32 %v690, %v695
        %v697 = vadd.f32 %v691, %v695
        %s698 = smul.u32 %s28, 4
        %s699 = scalar_lea.vmem %s3, %s698
        %v700 = vld [vmem:[%s699] sm:$0x7]
        %v701 = vpack.c.bf16 %v696, %v696
        %v702 = vpack.c.bf16 %v697, %v697
        %s703 = smul.u32 %s28, 16
        %s704 = smul.addr %s703, 4
        %s705 = scalar_lea.vmem %s2, %s704
        %v706 = vld [vmem:[%s705] sm:$0xf]
        %v707 = vld [vmem:[%s705 + $0x4] sm:$0xf]
        %v708 = vld [vmem:[%s705 + $0x8] sm:$0xf]
        %v709 = vld [vmem:[%s705 + $0xc] sm:$0xf]
        %v710 = vld [vmem:[%s705 + $0x10] sm:$0xf]
        %v711 = vld [vmem:[%s705 + $0x14] sm:$0xf]
        %v712 = vld [vmem:[%s705 + $0x18] sm:$0xf]
        %v713 = vld [vmem:[%s705 + $0x1c] sm:$0xf]
        %v714 = vld [vmem:[%s705 + $0x20] sm:$0xf]
        %v715 = vld [vmem:[%s705 + $0x24] sm:$0xf]
        %v716 = vld [vmem:[%s705 + $0x28] sm:$0xf]
        %v717 = vld [vmem:[%s705 + $0x2c] sm:$0xf]
        %v718 = vld [vmem:[%s705 + $0x30] sm:$0xf]
        %v719 = vld [vmem:[%s705 + $0x34] sm:$0xf]
        %v720 = vld [vmem:[%s705 + $0x38] sm:$0xf]
        %v721 = vld [vmem:[%s705 + $0x3c] sm:$0xf]
        %v722 = vlaneseq
        %v723 = vshrl.u32 %v722, 7
        %v724 = vsub.s32 0, %v723
        %v725 = vrot.slane %v700, %v724
        %v728 = vunpack.c.l.b16 %v701
        %v729 = vunpack.c.l.b16 %v702
        %v730 = vrot.slane %v729, 7
        %vm731 = vcmask 1041409
        %v732 = vsel %vm731, %v730, %v728
        %v733 = vpack.c.b16 %v732, %v732
        %v751 = vunpack.c.l.b16 %v706
        %v752 = vunpack.c.l.b16 %v707
        %v753 = vunpack.c.l.b16 %v708
        %v754 = vunpack.c.l.b16 %v709
        %v755 = vunpack.c.l.b16 %v710
        %v756 = vunpack.c.l.b16 %v711
        %v757 = vunpack.c.l.b16 %v712
        %v758 = vunpack.c.l.b16 %v713
        %v759 = vunpack.c.l.b16 %v714
        %v760 = vunpack.c.l.b16 %v715
        %v761 = vunpack.c.l.b16 %v716
        %v762 = vunpack.c.l.b16 %v717
        %v763 = vunpack.c.l.b16 %v718
        %v764 = vunpack.c.l.b16 %v719
        %v765 = vunpack.c.l.b16 %v720
        %v766 = vunpack.c.l.b16 %v721
        %v767 = vpack.c.b16 %v752, %v751
        %v768 = vpack.c.b16 %v754, %v753
        %v769 = vpack.c.b16 %v756, %v755
        %v770 = vpack.c.b16 %v758, %v757
        %v771 = vpack.c.b16 %v760, %v759
        %v772 = vpack.c.b16 %v762, %v761
        %v773 = vpack.c.b16 %v764, %v763
        %v774 = vpack.c.b16 %v766, %v765
        %783 = vmatprep.subr.bf16.mxu0 0
        %784 = vmatpush1.bf16.msra.mxu0 %v774
        %785 = vmatprep.subr.bf16.mxu0 0
        %786 = vmatpush1.bf16.msra.mxu0 %v773
        %787 = vmatprep.subr.bf16.mxu0 0
        %788 = vmatpush1.bf16.msra.mxu0 %v772
        %789 = vmatprep.subr.bf16.mxu0 0
        %790 = vmatpush1.bf16.msra.mxu0 %v771
        %791 = vmatprep.subr.bf16.mxu0 0
        %792 = vmatpush1.bf16.msra.mxu0 %v770
        %793 = vmatprep.subr.bf16.mxu0 0
        %794 = vmatpush1.bf16.msra.mxu0 %v769
        %795 = vmatprep.subr.bf16.mxu0 0
        %796 = vmatpush1.bf16.msra.mxu0 %v768
        %797 = vmatprep.subr.bf16.mxu0 0
        %798 = vmatpush1.bf16.msra.mxu0 %v767
        %799 = vmatprep.subr.bf16.mxu0 0
        %800 = vmatpush2.bf16.msra.mxu0 0
        %801 = vmatprep.subr.bf16.mxu0 0
        %802 = vmatpush2.bf16.msra.mxu0 0
        %803 = vmatprep.subr.bf16.mxu0 0
        %804 = vmatpush2.bf16.msra.mxu0 0
        %805 = vmatprep.subr.bf16.mxu0 0
        %806 = vmatpush2.bf16.msra.mxu0 0
        %807 = vmatprep.subr.bf16.mxu0 0
        %808 = vmatpush2.bf16.msra.mxu0 0
        %809 = vmatprep.subr.bf16.mxu0 0
        %810 = vmatpush2.bf16.msra.mxu0 0
        %811 = vmatprep.subr.bf16.mxu0 0
        %812 = vmatpush2.bf16.msra.mxu0 0
        %813 = vmatprep.subr.bf16.mxu0 0
        %814 = vmatpush2.bf16.msra.mxu0 0
        %815 = vmatprep.mubr.bf16.mxu0 0
        %816 = vmatmul.mubr.bf16.gmra.mxu0 %v733
        %v817 = vpop.f32.mrf.mxu0
        %v818 = vadd.f32 %v725, %v817
        %v819 = vpop.f32.mrf.mxu0
        %v820 = vpop.f32.mrf.mxu0
        %v821 = vpop.f32.mrf.mxu0
        %822 = vdwg.mxu0
        %vm823 = vcmp.gt.f32.partialorder %v818, 0.0
        %v824 = vmin.f32 %v818, 0.0
        %v825 = vmul.f32 %v824, 1.442695
        %v826 = vpow.pop %v825
        %v827 = vsub.f32 %v826, 1.0
        %v828 = vsel %vm823, %v818, %v827
        %v829 = vlaneseq
        %v830 = vshrl.u32 %v829, 7
        %v831 = vsub.s32 1, %v830
        %v832 = vrot.slane %v700, %v831
        %v833 = vmul.f32 %v828, %v832
        %v834 = vlaneseq
        %v835 = vshrl.u32 %v834, 7
        %v836 = vsub.s32 2, %v835
        %v837 = vrot.slane %v700, %v836
        %v838 = vadd.f32 %v833, %v837
        %839 = vst [vmem:[%s489] sm:$0x3] %v838
        %v840 = vpack.c.bf16 %v838, %v838
        %s841 = smul.u32 %s28, 32
        %s842 = smul.addr %s841, 4
        %s843 = scalar_lea.vmem [#allocation3], %s842
        %v844 = vld [vmem:[%s843] sm:$0xff]
        %v845 = vld [vmem:[%s843 + $0x8] sm:$0xff]
        %v846 = vld [vmem:[%s843 + $0x10] sm:$0xff]
        %v847 = vld [vmem:[%s843 + $0x18] sm:$0xff]
        %v848 = vld [vmem:[%s843 + $0x20] sm:$0xff]
        %v849 = vld [vmem:[%s843 + $0x28] sm:$0xff]
        %v850 = vld [vmem:[%s843 + $0x30] sm:$0xff]
        %v851 = vld [vmem:[%s843 + $0x38] sm:$0xff]
        %v852 = vld [vmem:[%s843 + $0x40] sm:$0xff]
        %v853 = vld [vmem:[%s843 + $0x48] sm:$0xff]
        %v854 = vld [vmem:[%s843 + $0x50] sm:$0xff]
        %v855 = vld [vmem:[%s843 + $0x58] sm:$0xff]
        %v856 = vld [vmem:[%s843 + $0x60] sm:$0xff]
        %v857 = vld [vmem:[%s843 + $0x68] sm:$0xff]
        %v858 = vld [vmem:[%s843 + $0x70] sm:$0xff]
        %v859 = vld [vmem:[%s843 + $0x78] sm:$0xff]
        %v876 = vunpack.c.l.b16 %v844
        %v877 = vunpack.c.h.b16 %v844
        %v878 = vunpack.c.l.b16 %v845
        %v879 = vunpack.c.h.b16 %v845
        %v880 = vunpack.c.l.b16 %v846
        %v881 = vunpack.c.h.b16 %v846
        %v882 = vunpack.c.l.b16 %v847
        %v883 = vunpack.c.h.b16 %v847
        %v884 = vunpack.c.l.b16 %v848
        %v885 = vunpack.c.h.b16 %v848
        %v886 = vunpack.c.l.b16 %v849
        %v887 = vunpack.c.h.b16 %v849
        %v888 = vunpack.c.l.b16 %v850
        %v889 = vunpack.c.h.b16 %v850
        %v890 = vunpack.c.l.b16 %v851
        %v891 = vunpack.c.h.b16 %v851
        %v892 = vunpack.c.l.b16 %v852
        %v893 = vunpack.c.h.b16 %v852
        %v894 = vunpack.c.l.b16 %v853
        %v895 = vunpack.c.h.b16 %v853
        %v896 = vunpack.c.l.b16 %v854
        %v897 = vunpack.c.h.b16 %v854
        %v898 = vunpack.c.l.b16 %v855
        %v899 = vunpack.c.h.b16 %v855
        %v900 = vunpack.c.l.b16 %v856
        %v901 = vunpack.c.h.b16 %v856
        %v902 = vunpack.c.l.b16 %v857
        %v903 = vunpack.c.h.b16 %v857
        %v904 = vunpack.c.l.b16 %v858
        %v905 = vunpack.c.h.b16 %v858
        %v906 = vunpack.c.l.b16 %v859
        %v907 = vunpack.c.h.b16 %v859
        %v908 = vpack.c.b16 %v878, %v876
        %v909 = vpack.c.b16 %v879, %v877
        %v910 = vpack.c.b16 %v882, %v880
        %v911 = vpack.c.b16 %v883, %v881
        %v912 = vpack.c.b16 %v886, %v884
        %v913 = vpack.c.b16 %v887, %v885
        %v914 = vpack.c.b16 %v890, %v888
        %v915 = vpack.c.b16 %v891, %v889
        %v916 = vpack.c.b16 %v894, %v892
        %v917 = vpack.c.b16 %v895, %v893
        %v918 = vpack.c.b16 %v898, %v896
        %v919 = vpack.c.b16 %v899, %v897
        %v920 = vpack.c.b16 %v902, %v900
        %v921 = vpack.c.b16 %v903, %v901
        %v922 = vpack.c.b16 %v906, %v904
        %v923 = vpack.c.b16 %v907, %v905
        %940 = vmatprep.subr.bf16.mxu0 %v923
        %941 = vmatpush1.bf16.msra.mxu0 %v922
        %942 = vmatprep.subr.bf16.mxu0 %v921
        %943 = vmatpush1.bf16.msra.mxu0 %v920
        %944 = vmatprep.subr.bf16.mxu0 %v919
        %945 = vmatpush1.bf16.msra.mxu0 %v918
        %946 = vmatprep.subr.bf16.mxu0 %v917
        %947 = vmatpush1.bf16.msra.mxu0 %v916
        %948 = vmatprep.subr.bf16.mxu0 %v915
        %949 = vmatpush1.bf16.msra.mxu0 %v914
        %950 = vmatprep.subr.bf16.mxu0 %v913
        %951 = vmatpush1.bf16.msra.mxu0 %v912
        %952 = vmatprep.subr.bf16.mxu0 %v911
        %953 = vmatpush1.bf16.msra.mxu0 %v910
        %954 = vmatprep.subr.bf16.mxu0 %v909
        %955 = vmatpush1.bf16.msra.mxu0 %v908
        %956 = vmatprep.subr.bf16.mxu0 0
        %957 = vmatpush2.bf16.msra.mxu0 0
        %958 = vmatprep.subr.bf16.mxu0 0
        %959 = vmatpush2.bf16.msra.mxu0 0
        %960 = vmatprep.subr.bf16.mxu0 0
        %961 = vmatpush2.bf16.msra.mxu0 0
        %962 = vmatprep.subr.bf16.mxu0 0
        %963 = vmatpush2.bf16.msra.mxu0 0
        %964 = vmatprep.subr.bf16.mxu0 0
        %965 = vmatpush2.bf16.msra.mxu0 0
        %966 = vmatprep.subr.bf16.mxu0 0
        %967 = vmatpush2.bf16.msra.mxu0 0
        %968 = vmatprep.subr.bf16.mxu0 0
        %969 = vmatpush2.bf16.msra.mxu0 0
        %970 = vmatprep.subr.bf16.mxu0 0
        %971 = vmatpush2.bf16.msra.mxu0 0
        %972 = vmatprep.mubr.bf16.mxu0 0
        %973 = vmatmul.mubr.bf16.gmra.mxu0 %v840
        %v974 = vpop.f32.mrf.mxu0
        %v975 = vadd.f32 0.0, %v974
        %v976 = vpop.f32.mrf.mxu0
        %v977 = vadd.f32 0.0, %v976
        %v978 = vpop.f32.mrf.mxu0
        %v979 = vpop.f32.mrf.mxu0
        %980 = vdwg.mxu0
        %s981 = scalar_lea.vmem %s5, %s28
        %v982 = vld [vmem:[%s981] sm:$0x1]
        %v984 = vlaneseq
        %v985 = vshrl.u32 %v984, 7
        %v986 = vsub.s32 0, %v985
        %v987 = vrot.slane %v982, %v986
        %v989 = vadd.f32 %v975, %v987
        %990 = vst [vmem:[%s496] sm:$0x3] %v989
        %p991 = scmp.eq.s32.totalorder %s28, 0
        // Predicated region
        $region94: #{pcb_ring_head2_forward.1} parent=84 // pred_check
          %p992 = pneg %p991
        $region95: #{pcb_ring_head2_forward.1} parent=84 // pred_check_branch
          %994 = sbr.rel (%p992) target = $region97
        $region96: #{pcb_ring_head2_forward.1} parent=84 // pred_region
          %v995 = vld [vmem:[%s6] sm:$0x1]
          %v997 = vlaneseq
          %v998 = vshrl.u32 %v997, 7
          %v999 = vsub.s32 0, %v998
          %v1000 = vrot.slane %v995, %v999
          %v1002 = vadd.f32 %v977, %v1000
          %1003 = vst [vmem:[#allocation6] sm:$0x3] %v1002
        $region97: #{pcb_ring_head2_forward.1} parent=84 // pred_fallthru
          _
        %p1004 = scmp.ne.s32.totalorder %s28, 0
        // Predicated region
        $region98: #{pcb_ring_head2_forward.1} parent=84 // pred_check
          %p1005 = pneg %p1004
        $region99: #{pcb_ring_head2_forward.1} parent=84 // pred_check_branch
          %1007 = sbr.rel (%p1005) target = $region101
        $region100: #{pcb_ring_head2_forward.1} parent=84 // pred_region
          %v1008 = vld [vmem:[#allocation6] sm:$0x3]
          %v1009 = vadd.f32 %v1008, %v977
          %1010 = vst [vmem:[#allocation6] sm:$0x3] %v1009
        $region101: #{pcb_ring_head2_forward.1} parent=84 // pred_fallthru
          _
        %p1011 = scmp.lt.s32.totalorder %s28, 3
        %s1012 = scalar_select %p1011, %s28, 3
        %p1013 = scmp.lt.s32.totalorder %s27, 0
        %s1014 = scalar_select %p1013, %s27, 0
        %s1015 = sadd.s32 %s1014, %s1012
        %s1016 = smul.addr %s1015, 2
        %s1017 = scalar_lea.vmem %s7, %s1016
        %p1018 = scmp.lt.s32.totalorder %s28, 3
        %s1019 = scalar_select %p1018, %s28, 3
        %p1020 = scmp.lt.s32.totalorder %s27, 0
        %s1021 = scalar_select %p1020, %s27, 0
        %s1022 = sadd.s32 %s1021, %s1019
        %s1023 = smul.addr %s1022, 2
        %s1024 = scalar_lea.vmem %s8, %s1023
        // Predicated region
        $region102: #{pcb_ring_head2_forward.1} parent=84 // pred_check
          %p1025 = pneg %p209
        $region103: #{pcb_ring_head2_forward.1} parent=84 // pred_check_branch
          %1027 = sbr.rel (%p1025) target = $region105
        $region104: #{pcb_ring_head2_forward.1} parent=84 // pred_region
          _
        $region105: #{pcb_ring_head2_forward.1} parent=84 // pred_fallthru
          _
        // Predicated region
        $region106: #{pcb_ring_head2_forward.1} parent=84 // pred_check
          %p1028 = pneg %p237
        $region107: #{pcb_ring_head2_forward.1} parent=84 // pred_check_branch
          %1030 = sbr.rel (%p1028) target = $region109
        $region108: #{pcb_ring_head2_forward.1} parent=84 // pred_region
          _
        $region109: #{pcb_ring_head2_forward.1} parent=84 // pred_fallthru
          _
        // Predicated region
        $region110: #{pcb_ring_head2_forward.1} parent=84 // pred_check
          %p1031 = pneg %p263
        $region111: #{pcb_ring_head2_forward.1} parent=84 // pred_check_branch
          %1033 = sbr.rel (%p1031) target = $region113
        $region112: #{pcb_ring_head2_forward.1} parent=84 // pred_region
          %s1035 = ssub.s32 32, 32
          %1036 = vsyncadd [#allocation5], %s1035
          %s1037 = smul.addr %s27, 32
          %s1038 = scalar_lea.hbm %s9, %s1037
          %s1040 = sshll.u32 [#allocation6], 4
          %s1041 = int_to_ptr.vmem [resolvable:$true] %s1040
          %1043 = dma.vmem_to_hbm [thread:$0]  %s1041, 32, %s1038, [#allocation5]
        $region113: #{pcb_ring_head2_forward.1} parent=84 // pred_fallthru
          _
        // Predicated region
        $region114: #{pcb_ring_head2_forward.1} parent=84 // pred_check
          %p1044 = pneg %p263
        $region115: #{pcb_ring_head2_forward.1} parent=84 // pred_check_branch
          %1046 = sbr.rel (%p1044) target = $region117
        $region116: #{pcb_ring_head2_forward.1} parent=84 // pred_region
          %1047 = dma.done [#allocation5], 32
        $region117: #{pcb_ring_head2_forward.1} parent=84 // pred_fallthru
          _
      $region85: #{pcb_ring_head2_forward.1} parent=5 // pred_fallthru
        _
      %p1048 = scmp.le.s32.totalorder 2, %s18
      // Predicated region
      $region118: #{pcb_ring_head2_forward.1} parent=5 // pred_check
        %p1049 = pneg %p1048
      $region119: #{pcb_ring_head2_forward.1} parent=5 // pred_check_branch
        %1051 = sbr.rel (%p1049) target = $region121
      $region120: #{pcb_ring_head2_forward.1} parent=5 // pred_region
        %s1052 = ssub.s32 %s18, 2
        // Predicated region
        $region122: #{pcb_ring_head2_forward.1} parent=120 // pred_check
          %p1053 = pneg %p215
        $region123: #{pcb_ring_head2_forward.1} parent=120 // pred_check_branch
          %1055 = sbr.rel (%p1053) target = $region125
        $region124: #{pcb_ring_head2_forward.1} parent=120 // pred_region
          %p1056 = scmp.lt.s32.totalorder %s30, 3
          %s1057 = scalar_select %p1056, %s30, 3
          %p1058 = scmp.lt.s32.totalorder %s29, 0
          %s1059 = scalar_select %p1058, %s29, 0
          %s1060 = sadd.s32 %s1059, %s1057
          %s1061 = smul.addr %s1060, 2
          %s1062 = scalar_lea.vmem %s7, %s1061
        $region125: #{pcb_ring_head2_forward.1} parent=120 // pred_fallthru
          _
        // Predicated region
        $region126: #{pcb_ring_head2_forward.1} parent=120 // pred_check
          %p1063 = pneg %p243
        $region127: #{pcb_ring_head2_forward.1} parent=120 // pred_check_branch
          %1065 = sbr.rel (%p1063) target = $region129
        $region128: #{pcb_ring_head2_forward.1} parent=120 // pred_region
          %p1066 = scmp.lt.s32.totalorder %s30, 3
          %s1067 = scalar_select %p1066, %s30, 3
          %p1068 = scmp.lt.s32.totalorder %s29, 0
          %s1069 = scalar_select %p1068, %s29, 0
          %s1070 = sadd.s32 %s1069, %s1067
          %s1071 = smul.addr %s1070, 2
          %s1072 = scalar_lea.vmem %s8, %s1071
        $region129: #{pcb_ring_head2_forward.1} parent=120 // pred_fallthru
          _
      $region121: #{pcb_ring_head2_forward.1} parent=5 // pred_fallthru
        _
    $region6: #{pcb_ring_head2_forward.1} parent=1 // loop_footer
      %s22 = sadd.s32 1, %s18
    $region7: #{pcb_ring_head2_forward.1} parent=1 // loop_footer_branch
      %17 = sbr.rel target = $region3
    $region8: #{pcb_ring_head2_forward.1} parent=1 // loop_exit
      _
    %1073 = vsyncpa [#allocation4], 1
    %s1074 = scalar_lea.sflag [#allocation4], 1
    %1075 = vsyncpa %s1074, 1
    %1076 = vsyncpa [#allocation5], 1
    %s1077 = scalar_lea.sflag [#allocation5], 1
    %1078 = vsyncpa %s1077, 1

</llo_original>
